<compile_context>
chip_gen: v5e
topology: v5e:2x2
jax: 0.10.0
libtpu: 0.0.40
codegen_flags: <defaults>
</compile_context>

<pallas_src>
import functools

import numpy as np
import jax
import jax.numpy as jnp
from jax import lax
from jax.experimental import pallas as pl
from jax.experimental.pallas import tpu as pltpu


# ------------------------------ Pallas kernel -------------------------------
def _diffusion_kernel(xs_ref, sr_ref, nz_ref,          # VMEM (B, C, TS, 128) f32
                      w_ref,                           # SMEM (C, 2C)  [w_sr | w_x]
                      cond_ref,                        # SMEM (C, B)   bias_c + a_b*nemb_c
                      a_ref, sq_ref, ia_ref, sia_ref,  # SMEM (B,) schedule scalars
                      x1_ref,                          # VMEM (B, C, TS, 128) out
                      loss_ref,                        # VMEM (1, TL, 128) out
                      *, hw, masked):
    B, C, TS, L = xs_ref.shape
    TL = loss_ref.shape[1]

    acc = jnp.zeros((TS, L), jnp.float32)              # lane-shaped L1 partial

    for b in range(B):
        a, sq = a_ref[b], sq_ref[b]
        ia, sia = ia_ref[b], sia_ref[b]

        sr_rows = [sr_ref[b, k] for k in range(C)]
        # q_sample: x_noisy = a * x_start + sqrt(1 - a^2) * noise
        xn_rows = [a * xs_ref[b, k] + sq * nz_ref[b, k] for k in range(C)]

        for c in range(C):
            # synthetic denoise_fn(cat([SR, x_noisy], dim=1), noise_level):
            # tiny CxC 1x1 conv, unrolled as 2C broadcast FMAs on the VPU with
            # SMEM scalar weights (MXU would be idle at C=4).
            # TODO(synk): for C >~ 32 switch this to an MXU (T,2C)@(2C,C) dot.
            rc = cond_ref[c, b] + w_ref[c, 0] * sr_rows[0] + w_ref[c, C] * xn_rows[0]
            for k in range(1, C):
                rc = rc + w_ref[c, k] * sr_rows[k] + w_ref[c, C + k] * xn_rows[k]

            # q_predict_start_from_noise + clamp + rescale, fused per channel:
            #   x_0 = (1/a) * x_noisy - sqrt(1-a^2)/a * x_recon
            x0 = ia * xn_rows[c] - sia * rc
            x1_ref[b, c, :, :] = ((jnp.clip(x0, -1.0, 1.0) + 1.0) * 0.5).astype(x1_ref.dtype)

            # partial L1 sum for loss_func(noise, x_recon)
            acc = acc + jnp.abs(nz_ref[b, c] - rc)

    if masked:  # zero out spatial-padding columns (static python flag)
        base = pl.program_id(0) * TS
        s_idx = lax.broadcasted_iota(jnp.int32, (TS, L), 0)
        l_idx = lax.broadcasted_iota(jnp.int32, (TS, L), 1)
        acc = jnp.where((base + s_idx) * L + l_idx < hw, acc, 0.0)

    if TL != TS:  # fold sublane groups with VPU adds (no cross-lane reduce)
        acc = acc.reshape(TS // TL, TL, L).sum(axis=0)
    loss_ref[...] = acc[None]


# ------------------------------- planning -----------------------------------
def _vmem_plan():
    """(io/compute working-set budget, vmem_limit_bytes), generation-aware."""
    phys = 64 * 1024 * 1024                     # conservative default (v7x / TC)
    try:
        phys = int(getattr(pltpu.get_tpu_info(), "vmem_capacity_bytes", phys))
    except Exception:
        pass
    if phys <= 64 * 1024 * 1024:                # v7x-class: 64 MiB VMEM per TC
        return 16 * 1024 * 1024, 32 * 1024 * 1024
    return 40 * 1024 * 1024, 64 * 1024 * 1024   # v5e / v6e: 128 MiB physical


def _plan_tiles(S0, bytes_per_row, budget):
    """Pick (ts, num_t): ts multiple of 8 (or full S0 if tiny), working set under
    budget, and >= 2 grid steps when possible (v7x megacore)."""
    if S0 <= 8:
        return S0, 1
    cap = max(8, min(S0, budget // max(bytes_per_row, 1)) // 8 * 8)
    two_step = -(-S0 // 2)                      # ceil(S0 / 2)
    two_step = -(-two_step // 8) * 8            # round up to multiple of 8
    ts = max(8, min(cap, two_step))
    num_t = -(-S0 // ts)
    return ts, num_t


# ------------------------------- wrapper ------------------------------------
def gaussian_diffusion_forward(x_hr, x_sr, noise, cont_sqrt_alpha,
                               w_sr, w_x, bias, nemb,
                               out_dtype=jnp.float32):
    """Returns (loss1, x_1), matching GaussianDiffusion.forward / p_losses."""
    B, C, H, W = x_hr.shape
    HW = H * W
    LANES = 128

    S0 = -(-HW // LANES)                        # sublane rows of 128 lanes
    io_budget, vmem_limit = _vmem_plan()

    out_isz = jnp.dtype(out_dtype).itemsize
    # honest per-sublane-row VMEM cost: double-buffered I/O + f32 temporaries
    bytes_per_row = (2 * 3 * B * C * LANES * 4          # xs / sr / nz
                     + 2 * B * C * LANES * out_isz      # x1 writeback
                     + (2 * C + 6) * LANES * 4)         # in-kernel f32 temps
    ts, num_t = _plan_tiles(S0, bytes_per_row, io_budget)
    S_pad = ts * num_t
    HW_pad = S_pad * LANES
    masked = HW_pad != HW

    def to_tiles(x):
        x = x.reshape(B, C, HW).astype(jnp.float32)     # stream f32 (no bf16 cast pass)
        if HW_pad != HW:
            x = jnp.pad(x, ((0, 0), (0, 0), (0, HW_pad - HW)))
        return x.reshape(B, C, S_pad, LANES)

    xs, sr, nz = to_tiles(x_hr), to_tiles(x_sr), to_tiles(noise)

    # per-batch schedule scalars precomputed once, read from SMEM in-kernel
    a = cont_sqrt_alpha.reshape(B).astype(jnp.float32)
    sq = jnp.sqrt(1.0 - a * a)
    ia = 1.0 / a
    sia = sq * ia
    bias_v = bias.reshape(-1).astype(jnp.float32)                      # (C,)
    nemb_v = nemb.reshape(-1).astype(jnp.float32)                      # (C,)
    w_cat = jnp.concatenate([w_sr, w_x], axis=1).astype(jnp.float32)   # (C, 2C)
    cond = bias_v[:, None] + nemb_v[:, None] * a[None, :]              # (C, B)

    TL = 8 if (ts % 8 == 0 and ts >= 8) else ts

    img_map = lambda t: (0, 0, t, 0)
    img_spec = pl.BlockSpec((B, C, ts, LANES), img_map)
    smem = pl.BlockSpec(memory_space=pltpu.MemorySpace.SMEM)

    kernel = functools.partial(_diffusion_kernel, hw=HW, masked=masked)

    x1_tiled, loss_part = pl.pallas_call(
        kernel,
        out_shape=(jax.ShapeDtypeStruct((B, C, S_pad, LANES), out_dtype),
                   jax.ShapeDtypeStruct((num_t, TL, LANES), jnp.float32)),
        grid_spec=pl.GridSpec(
            grid=(num_t,),
            in_specs=[img_spec, img_spec, img_spec,      # HR / SR / noise
                      smem,                              # [w_sr | w_x]
                      smem,                              # conditioning (C, B)
                      smem, smem, smem, smem],           # a, sqrt(1-a^2), 1/a, sq/a
            out_specs=(pl.BlockSpec((B, C, ts, LANES), img_map),      # x_1
                       pl.BlockSpec((1, TL, LANES), lambda t: (t, 0, 0))),  # L1 partials
        ),
        compiler_params=pltpu.CompilerParams(
            dimension_semantics=("parallel",),           # disjoint output tiles
            vmem_limit_bytes=vmem_limit),
    )(xs, sr, nz, w_cat, cond, a, sq, ia, sia)

    # loss = 1.667 * 2000 * L1(noise, x_recon)   (reduction='mean')
    l1 = jnp.sum(loss_part) / float(B * C * HW)
    loss = 1.667 * 2000.0 * l1

    # TODO(synk): L_clip / learned-prompt CLIP features require a pretrained
    # CLIP model + checkpoint; no Pallas equivalent — contribution set to 0.
    loss_clip = 0.0
    loss1 = 0.6 * loss + 0.4 * loss_clip

    x1 = x1_tiled.reshape(B, C, HW_pad)[:, :, :HW].reshape(B, C, H, W)
    return loss1, x1


# --------------------------- pure-JAX reference ------------------------------
def _reference(x_hr, x_sr, noise, a, w_sr, w_x, bias, nemb):
    B, C, H, W = x_hr.shape
    a4 = a.reshape(B, 1, 1, 1)
    sq = jnp.sqrt(1.0 - a4 * a4)
    x_noisy = a4 * x_hr + sq * noise
    inp = jnp.concatenate([x_sr, x_noisy], axis=1)                     # (B, 2C, H, W)
    w = jnp.concatenate([w_sr, w_x], axis=1)                           # (C, 2C)
    x_recon = (jnp.einsum('ck,bkhw->bchw', w, inp)
               + bias.reshape(1, C, 1, 1) + a4 * nemb.reshape(1, C, 1, 1))
    x0 = (1.0 / a4) * x_noisy - sq * (1.0 / a4) * x_recon
    x1 = (jnp.clip(x0, -1.0, 1.0) + 1.0) / 2.0
    loss = 1.667 * 2000.0 * jnp.mean(jnp.abs(noise - x_recon))
    return 0.6 * loss, x1


# --------------------------------- main --------------------------------------
if __name__ == "__main__":
    B, C, H, W = 2, 4, 16, 16
    n_timestep = 100

    # set_new_noise_schedule ('linear'), done in numpy as in the module
    betas = np.linspace(1e-4, 2e-2, n_timestep, dtype=np.float64)
    alphas_cumprod = np.cumprod(1.0 - betas)
    sqrt_alphas_cumprod_prev = np.sqrt(np.append(1.0, alphas_cumprod))

    key = jax.random.PRNGKey(0)
    kh, ks, kn, ku, kw1, kw2, kb, ke = jax.random.split(key, 8)

    x_hr = jax.random.uniform(kh, (B, C, H, W), jnp.float32, -1.0, 1.0)   # x_in['HR']
    x_sr = jax.random.uniform(ks, (B, C, H, W), jnp.float32, -1.0, 1.0)   # x_in['SR']
    noise = jax.random.normal(kn, (B, C, H, W), jnp.float32)

    # t ~ randint(1, num_timesteps+1) — fixed deterministically here
    t = n_timestep // 2
    lo = float(sqrt_alphas_cumprod_prev[t - 1])
    hi = float(sqrt_alphas_cumprod_prev[t])
    cont_sqrt_alpha = jax.random.uniform(ku, (B,), jnp.float32, lo, hi)

    # deterministic synthetic denoiser params
    w_sr = 0.05 * jax.random.normal(kw1, (C, C), jnp.float32)
    w_x = 0.05 * jax.random.normal(kw2, (C, C), jnp.float32)
    bias = 0.01 * jax.random.normal(kb, (C,), jnp.float32)
    nemb = 0.01 * jax.random.normal(ke, (C,), jnp.float32)

    loss1, x1 = gaussian_diffusion_forward(
        x_hr, x_sr, noise, cont_sqrt_alpha, w_sr, w_x, bias, nemb)
    jax.block_until_ready((loss1, x1))

    # correctness against a pure-JAX reference of the same forward
    loss_ref, x1_ref = _reference(x_hr, x_sr, noise, cont_sqrt_alpha,
                                  w_sr, w_x, bias, nemb)
    np.testing.assert_allclose(np.asarray(x1), np.asarray(x1_ref),
                               rtol=1e-4, atol=1e-4)
    np.testing.assert_allclose(float(loss1), float(loss_ref),
                               rtol=1e-3, atol=1e-3)
    assert np.isfinite(float(loss1))
    assert x1.shape == (B, C, H, W)
    print("KERNEL_OK")
</pallas_src>

<mosaic_0001>
module attributes {stable_mosaic.version = 11 : i64} {
  func.func @_diffusion_kernel(%arg0: i32, %arg1: memref<2x4x2x128xf32, #tpu.memory_space<vmem>>, %arg2: memref<2x4x2x128xf32, #tpu.memory_space<vmem>>, %arg3: memref<2x4x2x128xf32, #tpu.memory_space<vmem>>, %arg4: memref<4x8xf32, #tpu.memory_space<smem>>, %arg5: memref<4x2xf32, #tpu.memory_space<smem>>, %arg6: memref<2xf32, #tpu.memory_space<smem>>, %arg7: memref<2xf32, #tpu.memory_space<smem>>, %arg8: memref<2xf32, #tpu.memory_space<smem>>, %arg9: memref<2xf32, #tpu.memory_space<smem>>, %arg10: memref<2x4x2x128xf32, #tpu.memory_space<vmem>>, %arg11: memref<1x2x128xf32, #tpu.memory_space<vmem>>) attributes {dimension_semantics = [#tpu.dimension_semantics<parallel>], iteration_bounds = array<i64: 1>, scalar_prefetch = 0 : i64, scratch_operands = 0 : i64, tpu.core_type = #tpu.core_type<tc>, window_params = [{transform_indices = @transform_0, window_bounds = array<i64: 2, 4, 2, 128>}, {transform_indices = @transform_1, window_bounds = array<i64: 2, 4, 2, 128>}, {transform_indices = @transform_2, window_bounds = array<i64: 2, 4, 2, 128>}, {transform_indices = @transform_3, window_bounds = array<i64: 4, 8>}, {transform_indices = @transform_4, window_bounds = array<i64: 4, 2>}, {transform_indices = @transform_5, window_bounds = array<i64: 2>}, {transform_indices = @transform_6, window_bounds = array<i64: 2>}, {transform_indices = @transform_7, window_bounds = array<i64: 2>}, {transform_indices = @transform_8, window_bounds = array<i64: 2>}, {transform_indices = @transform_9, window_bounds = array<i64: 2, 4, 2, 128>}, {transform_indices = @transform_10, window_bounds = array<i64: 1, 2, 128>}]} {
    %cst = arith.constant 0.000000e+00 : f32
    %0 = vector.broadcast %cst : f32 to vector<2x128xf32>
    %c0 = arith.constant 0 : index
    %1 = memref.load %arg6[%c0] : memref<2xf32, #tpu.memory_space<smem>>
    %c0_0 = arith.constant 0 : index
    %2 = memref.load %arg7[%c0_0] : memref<2xf32, #tpu.memory_space<smem>>
    %c0_1 = arith.constant 0 : index
    %3 = memref.load %arg8[%c0_1] : memref<2xf32, #tpu.memory_space<smem>>
    %c0_2 = arith.constant 0 : index
    %4 = memref.load %arg9[%c0_2] : memref<2xf32, #tpu.memory_space<smem>>
    %c0_3 = arith.constant 0 : index
    %c0_4 = arith.constant 0 : index
    %c0_5 = arith.constant 0 : index
    %c0_6 = arith.constant 0 : index
    %5 = vector.load %arg2[%c0_3, %c0_4, %c0_5, %c0_6] : memref<2x4x2x128xf32, #tpu.memory_space<vmem>>, vector<1x1x2x128xf32>
    %6 = vector.shape_cast %5 : vector<1x1x2x128xf32> to vector<2x128xf32>
    %c0_7 = arith.constant 0 : index
    %c1 = arith.constant 1 : index
    %c0_8 = arith.constant 0 : index
    %c0_9 = arith.constant 0 : index
    %7 = vector.load %arg2[%c0_7, %c1, %c0_8, %c0_9] : memref<2x4x2x128xf32, #tpu.memory_space<vmem>>, vector<1x1x2x128xf32>
    %8 = vector.shape_cast %7 : vector<1x1x2x128xf32> to vector<2x128xf32>
    %c0_10 = arith.constant 0 : index
    %c2 = arith.constant 2 : index
    %c0_11 = arith.constant 0 : index
    %c0_12 = arith.constant 0 : index
    %9 = vector.load %arg2[%c0_10, %c2, %c0_11, %c0_12] : memref<2x4x2x128xf32, #tpu.memory_space<vmem>>, vector<1x1x2x128xf32>
    %10 = vector.shape_cast %9 : vector<1x1x2x128xf32> to vector<2x128xf32>
    %c0_13 = arith.constant 0 : index
    %c3 = arith.constant 3 : index
    %c0_14 = arith.constant 0 : index
    %c0_15 = arith.constant 0 : index
    %11 = vector.load %arg2[%c0_13, %c3, %c0_14, %c0_15] : memref<2x4x2x128xf32, #tpu.memory_space<vmem>>, vector<1x1x2x128xf32>
    %12 = vector.shape_cast %11 : vector<1x1x2x128xf32> to vector<2x128xf32>
    %c0_16 = arith.constant 0 : index
    %c0_17 = arith.constant 0 : index
    %c0_18 = arith.constant 0 : index
    %c0_19 = arith.constant 0 : index
    %13 = vector.load %arg1[%c0_16, %c0_17, %c0_18, %c0_19] : memref<2x4x2x128xf32, #tpu.memory_space<vmem>>, vector<1x1x2x128xf32>
    %14 = vector.shape_cast %13 : vector<1x1x2x128xf32> to vector<2x128xf32>
    %15 = vector.broadcast %1 : f32 to vector<2x128xf32>
    %16 = arith.mulf %15, %14 : vector<2x128xf32>
    %c0_20 = arith.constant 0 : index
    %c0_21 = arith.constant 0 : index
    %c0_22 = arith.constant 0 : index
    %c0_23 = arith.constant 0 : index
    %17 = vector.load %arg3[%c0_20, %c0_21, %c0_22, %c0_23] : memref<2x4x2x128xf32, #tpu.memory_space<vmem>>, vector<1x1x2x128xf32>
    %18 = vector.shape_cast %17 : vector<1x1x2x128xf32> to vector<2x128xf32>
    %19 = vector.broadcast %2 : f32 to vector<2x128xf32>
    %20 = arith.mulf %19, %18 : vector<2x128xf32>
    %21 = arith.addf %16, %20 : vector<2x128xf32>
    %c0_24 = arith.constant 0 : index
    %c1_25 = arith.constant 1 : index
    %c0_26 = arith.constant 0 : index
    %c0_27 = arith.constant 0 : index
    %22 = vector.load %arg1[%c0_24, %c1_25, %c0_26, %c0_27] : memref<2x4x2x128xf32, #tpu.memory_space<vmem>>, vector<1x1x2x128xf32>
    %23 = vector.shape_cast %22 : vector<1x1x2x128xf32> to vector<2x128xf32>
    %24 = vector.broadcast %1 : f32 to vector<2x128xf32>
    %25 = arith.mulf %24, %23 : vector<2x128xf32>
    %c0_28 = arith.constant 0 : index
    %c1_29 = arith.constant 1 : index
    %c0_30 = arith.constant 0 : index
    %c0_31 = arith.constant 0 : index
    %26 = vector.load %arg3[%c0_28, %c1_29, %c0_30, %c0_31] : memref<2x4x2x128xf32, #tpu.memory_space<vmem>>, vector<1x1x2x128xf32>
    %27 = vector.shape_cast %26 : vector<1x1x2x128xf32> to vector<2x128xf32>
    %28 = vector.broadcast %2 : f32 to vector<2x128xf32>
    %29 = arith.mulf %28, %27 : vector<2x128xf32>
    %30 = arith.addf %25, %29 : vector<2x128xf32>
    %c0_32 = arith.constant 0 : index
    %c2_33 = arith.constant 2 : index
    %c0_34 = arith.constant 0 : index
    %c0_35 = arith.constant 0 : index
    %31 = vector.load %arg1[%c0_32, %c2_33, %c0_34, %c0_35] : memref<2x4x2x128xf32, #tpu.memory_space<vmem>>, vector<1x1x2x128xf32>
    %32 = vector.shape_cast %31 : vector<1x1x2x128xf32> to vector<2x128xf32>
    %33 = vector.broadcast %1 : f32 to vector<2x128xf32>
    %34 = arith.mulf %33, %32 : vector<2x128xf32>
    %c0_36 = arith.constant 0 : index
    %c2_37 = arith.constant 2 : index
    %c0_38 = arith.constant 0 : index
    %c0_39 = arith.constant 0 : index
    %35 = vector.load %arg3[%c0_36, %c2_37, %c0_38, %c0_39] : memref<2x4x2x128xf32, #tpu.memory_space<vmem>>, vector<1x1x2x128xf32>
    %36 = vector.shape_cast %35 : vector<1x1x2x128xf32> to vector<2x128xf32>
    %37 = vector.broadcast %2 : f32 to vector<2x128xf32>
    %38 = arith.mulf %37, %36 : vector<2x128xf32>
    %39 = arith.addf %34, %38 : vector<2x128xf32>
    %c0_40 = arith.constant 0 : index
    %c3_41 = arith.constant 3 : index
    %c0_42 = arith.constant 0 : index
    %c0_43 = arith.constant 0 : index
    %40 = vector.load %arg1[%c0_40, %c3_41, %c0_42, %c0_43] : memref<2x4x2x128xf32, #tpu.memory_space<vmem>>, vector<1x1x2x128xf32>
    %41 = vector.shape_cast %40 : vector<1x1x2x128xf32> to vector<2x128xf32>
    %42 = vector.broadcast %1 : f32 to vector<2x128xf32>
    %43 = arith.mulf %42, %41 : vector<2x128xf32>
    %c0_44 = arith.constant 0 : index
    %c3_45 = arith.constant 3 : index
    %c0_46 = arith.constant 0 : index
    %c0_47 = arith.constant 0 : index
    %44 = vector.load %arg3[%c0_44, %c3_45, %c0_46, %c0_47] : memref<2x4x2x128xf32, #tpu.memory_space<vmem>>, vector<1x1x2x128xf32>
    %45 = vector.shape_cast %44 : vector<1x1x2x128xf32> to vector<2x128xf32>
    %46 = vector.broadcast %2 : f32 to vector<2x128xf32>
    %47 = arith.mulf %46, %45 : vector<2x128xf32>
    %48 = arith.addf %43, %47 : vector<2x128xf32>
    %c0_48 = arith.constant 0 : index
    %c0_49 = arith.constant 0 : index
    %49 = memref.load %arg5[%c0_48, %c0_49] : memref<4x2xf32, #tpu.memory_space<smem>>
    %c0_50 = arith.constant 0 : index
    %c0_51 = arith.constant 0 : index
    %50 = memref.load %arg4[%c0_50, %c0_51] : memref<4x8xf32, #tpu.memory_space<smem>>
    %51 = vector.broadcast %50 : f32 to vector<2x128xf32>
    %52 = arith.mulf %51, %6 : vector<2x128xf32>
    %53 = vector.broadcast %49 : f32 to vector<2x128xf32>
    %54 = arith.addf %53, %52 : vector<2x128xf32>
    %c0_52 = arith.constant 0 : index
    %c4 = arith.constant 4 : index
    %55 = memref.load %arg4[%c0_52, %c4] : memref<4x8xf32, #tpu.memory_space<smem>>
    %56 = vector.broadcast %55 : f32 to vector<2x128xf32>
    %57 = arith.mulf %56, %21 : vector<2x128xf32>
    %58 = arith.addf %54, %57 : vector<2x128xf32>
    %c0_53 = arith.constant 0 : index
    %c1_54 = arith.constant 1 : index
    %59 = memref.load %arg4[%c0_53, %c1_54] : memref<4x8xf32, #tpu.memory_space<smem>>
    %60 = vector.broadcast %59 : f32 to vector<2x128xf32>
    %61 = arith.mulf %60, %8 : vector<2x128xf32>
    %62 = arith.addf %58, %61 : vector<2x128xf32>
    %c0_55 = arith.constant 0 : index
    %c5 = arith.constant 5 : index
    %63 = memref.load %arg4[%c0_55, %c5] : memref<4x8xf32, #tpu.memory_space<smem>>
    %64 = vector.broadcast %63 : f32 to vector<2x128xf32>
    %65 = arith.mulf %64, %30 : vector<2x128xf32>
    %66 = arith.addf %62, %65 : vector<2x128xf32>
    %c0_56 = arith.constant 0 : index
    %c2_57 = arith.constant 2 : index
    %67 = memref.load %arg4[%c0_56, %c2_57] : memref<4x8xf32, #tpu.memory_space<smem>>
    %68 = vector.broadcast %67 : f32 to vector<2x128xf32>
    %69 = arith.mulf %68, %10 : vector<2x128xf32>
    %70 = arith.addf %66, %69 : vector<2x128xf32>
    %c0_58 = arith.constant 0 : index
    %c6 = arith.constant 6 : index
    %71 = memref.load %arg4[%c0_58, %c6] : memref<4x8xf32, #tpu.memory_space<smem>>
    %72 = vector.broadcast %71 : f32 to vector<2x128xf32>
    %73 = arith.mulf %72, %39 : vector<2x128xf32>
    %74 = arith.addf %70, %73 : vector<2x128xf32>
    %c0_59 = arith.constant 0 : index
    %c3_60 = arith.constant 3 : index
    %75 = memref.load %arg4[%c0_59, %c3_60] : memref<4x8xf32, #tpu.memory_space<smem>>
    %76 = vector.broadcast %75 : f32 to vector<2x128xf32>
    %77 = arith.mulf %76, %12 : vector<2x128xf32>
    %78 = arith.addf %74, %77 : vector<2x128xf32>
    %c0_61 = arith.constant 0 : index
    %c7 = arith.constant 7 : index
    %79 = memref.load %arg4[%c0_61, %c7] : memref<4x8xf32, #tpu.memory_space<smem>>
    %80 = vector.broadcast %79 : f32 to vector<2x128xf32>
    %81 = arith.mulf %80, %48 : vector<2x128xf32>
    %82 = arith.addf %78, %81 : vector<2x128xf32>
    %83 = vector.broadcast %3 : f32 to vector<2x128xf32>
    %84 = arith.mulf %83, %21 : vector<2x128xf32>
    %85 = vector.broadcast %4 : f32 to vector<2x128xf32>
    %86 = arith.mulf %85, %82 : vector<2x128xf32>
    %87 = arith.subf %84, %86 : vector<2x128xf32>
    %cst_62 = arith.constant -1.000000e+00 : f32
    %cst_63 = arith.constant 1.000000e+00 : f32
    %88 = vector.broadcast %cst_62 : f32 to vector<2x128xf32>
    %89 = arith.maximumf %88, %87 : vector<2x128xf32>
    %90 = vector.broadcast %cst_63 : f32 to vector<2x128xf32>
    %91 = arith.minimumf %90, %89 : vector<2x128xf32>
    %cst_64 = arith.constant 1.000000e+00 : f32
    %92 = vector.broadcast %cst_64 : f32 to vector<2x128xf32>
    %93 = arith.addf %91, %92 : vector<2x128xf32>
    %cst_65 = arith.constant 5.000000e-01 : f32
    %94 = vector.broadcast %cst_65 : f32 to vector<2x128xf32>
    %95 = arith.mulf %93, %94 : vector<2x128xf32>
    %c0_66 = arith.constant 0 : index
    %c0_67 = arith.constant 0 : index
    %c0_68 = arith.constant 0 : index
    %c0_69 = arith.constant 0 : index
    %96 = vector.load %arg10[%c0_66, %c0_67, %c0_68, %c0_69] : memref<2x4x2x128xf32, #tpu.memory_space<vmem>>, vector<1x1x2x128xf32>
    %97 = vector.shape_cast %96 : vector<1x1x2x128xf32> to vector<2x128xf32>
    %98 = vector.shape_cast %95 : vector<2x128xf32> to vector<1x1x2x128xf32>
    tpu.vector_store %arg10[%c0_66, %c0_67, %c0_68, %c0_69], %98 {strides = array<i32>} : memref<2x4x2x128xf32, #tpu.memory_space<vmem>>, vector<1x1x2x128xf32>,
    %c0_70 = arith.constant 0 : index
    %c0_71 = arith.constant 0 : index
    %c0_72 = arith.constant 0 : index
    %c0_73 = arith.constant 0 : index
    %99 = vector.load %arg3[%c0_70, %c0_71, %c0_72, %c0_73] : memref<2x4x2x128xf32, #tpu.memory_space<vmem>>, vector<1x1x2x128xf32>
    %100 = vector.shape_cast %99 : vector<1x1x2x128xf32> to vector<2x128xf32>
    %101 = arith.subf %100, %82 : vector<2x128xf32>
    %102 = math.absf %101 : vector<2x128xf32>
    %103 = arith.addf %0, %102 : vector<2x128xf32>
    %c1_74 = arith.constant 1 : index
    %c0_75 = arith.constant 0 : index
    %104 = memref.load %arg5[%c1_74, %c0_75] : memref<4x2xf32, #tpu.memory_space<smem>>
    %c1_76 = arith.constant 1 : index
    %c0_77 = arith.constant 0 : index
    %105 = memref.load %arg4[%c1_76, %c0_77] : memref<4x8xf32, #tpu.memory_space<smem>>
    %106 = vector.broadcast %105 : f32 to vector<2x128xf32>
    %107 = arith.mulf %106, %6 : vector<2x128xf32>
    %108 = vector.broadcast %104 : f32 to vector<2x128xf32>
    %109 = arith.addf %108, %107 : vector<2x128xf32>
    %c1_78 = arith.constant 1 : index
    %c4_79 = arith.constant 4 : index
    %110 = memref.load %arg4[%c1_78, %c4_79] : memref<4x8xf32, #tpu.memory_space<smem>>
    %111 = vector.broadcast %110 : f32 to vector<2x128xf32>
    %112 = arith.mulf %111, %21 : vector<2x128xf32>
    %113 = arith.addf %109, %112 : vector<2x128xf32>
    %c1_80 = arith.constant 1 : index
    %c1_81 = arith.constant 1 : index
    %114 = memref.load %arg4[%c1_80, %c1_81] : memref<4x8xf32, #tpu.memory_space<smem>>
    %115 = vector.broadcast %114 : f32 to vector<2x128xf32>
    %116 = arith.mulf %115, %8 : vector<2x128xf32>
    %117 = arith.addf %113, %116 : vector<2x128xf32>
    %c1_82 = arith.constant 1 : index
    %c5_83 = arith.constant 5 : index
    %118 = memref.load %arg4[%c1_82, %c5_83] : memref<4x8xf32, #tpu.memory_space<smem>>
    %119 = vector.broadcast %118 : f32 to vector<2x128xf32>
    %120 = arith.mulf %119, %30 : vector<2x128xf32>
    %121 = arith.addf %117, %120 : vector<2x128xf32>
    %c1_84 = arith.constant 1 : index
    %c2_85 = arith.constant 2 : index
    %122 = memref.load %arg4[%c1_84, %c2_85] : memref<4x8xf32, #tpu.memory_space<smem>>
    %123 = vector.broadcast %122 : f32 to vector<2x128xf32>
    %124 = arith.mulf %123, %10 : vector<2x128xf32>
    %125 = arith.addf %121, %124 : vector<2x128xf32>
    %c1_86 = arith.constant 1 : index
    %c6_87 = arith.constant 6 : index
    %126 = memref.load %arg4[%c1_86, %c6_87] : memref<4x8xf32, #tpu.memory_space<smem>>
    %127 = vector.broadcast %126 : f32 to vector<2x128xf32>
    %128 = arith.mulf %127, %39 : vector<2x128xf32>
    %129 = arith.addf %125, %128 : vector<2x128xf32>
    %c1_88 = arith.constant 1 : index
    %c3_89 = arith.constant 3 : index
    %130 = memref.load %arg4[%c1_88, %c3_89] : memref<4x8xf32, #tpu.memory_space<smem>>
    %131 = vector.broadcast %130 : f32 to vector<2x128xf32>
    %132 = arith.mulf %131, %12 : vector<2x128xf32>
    %133 = arith.addf %129, %132 : vector<2x128xf32>
    %c1_90 = arith.constant 1 : index
    %c7_91 = arith.constant 7 : index
    %134 = memref.load %arg4[%c1_90, %c7_91] : memref<4x8xf32, #tpu.memory_space<smem>>
    %135 = vector.broadcast %134 : f32 to vector<2x128xf32>
    %136 = arith.mulf %135, %48 : vector<2x128xf32>
    %137 = arith.addf %133, %136 : vector<2x128xf32>
    %138 = vector.broadcast %3 : f32 to vector<2x128xf32>
    %139 = arith.mulf %138, %30 : vector<2x128xf32>
    %140 = vector.broadcast %4 : f32 to vector<2x128xf32>
    %141 = arith.mulf %140, %137 : vector<2x128xf32>
    %142 = arith.subf %139, %141 : vector<2x128xf32>
    %cst_92 = arith.constant -1.000000e+00 : f32
    %cst_93 = arith.constant 1.000000e+00 : f32
    %143 = vector.broadcast %cst_92 : f32 to vector<2x128xf32>
    %144 = arith.maximumf %143, %142 : vector<2x128xf32>
    %145 = vector.broadcast %cst_93 : f32 to vector<2x128xf32>
    %146 = arith.minimumf %145, %144 : vector<2x128xf32>
    %cst_94 = arith.constant 1.000000e+00 : f32
    %147 = vector.broadcast %cst_94 : f32 to vector<2x128xf32>
    %148 = arith.addf %146, %147 : vector<2x128xf32>
    %cst_95 = arith.constant 5.000000e-01 : f32
    %149 = vector.broadcast %cst_95 : f32 to vector<2x128xf32>
    %150 = arith.mulf %148, %149 : vector<2x128xf32>
    %c0_96 = arith.constant 0 : index
    %c1_97 = arith.constant 1 : index
    %c0_98 = arith.constant 0 : index
    %c0_99 = arith.constant 0 : index
    %151 = vector.load %arg10[%c0_96, %c1_97, %c0_98, %c0_99] : memref<2x4x2x128xf32, #tpu.memory_space<vmem>>, vector<1x1x2x128xf32>
    %152 = vector.shape_cast %151 : vector<1x1x2x128xf32> to vector<2x128xf32>
    %153 = vector.shape_cast %150 : vector<2x128xf32> to vector<1x1x2x128xf32>
    tpu.vector_store %arg10[%c0_96, %c1_97, %c0_98, %c0_99], %153 {strides = array<i32>} : memref<2x4x2x128xf32, #tpu.memory_space<vmem>>, vector<1x1x2x128xf32>,
    %c0_100 = arith.constant 0 : index
    %c1_101 = arith.constant 1 : index
    %c0_102 = arith.constant 0 : index
    %c0_103 = arith.constant 0 : index
    %154 = vector.load %arg3[%c0_100, %c1_101, %c0_102, %c0_103] : memref<2x4x2x128xf32, #tpu.memory_space<vmem>>, vector<1x1x2x128xf32>
    %155 = vector.shape_cast %154 : vector<1x1x2x128xf32> to vector<2x128xf32>
    %156 = arith.subf %155, %137 : vector<2x128xf32>
    %157 = math.absf %156 : vector<2x128xf32>
    %158 = arith.addf %103, %157 : vector<2x128xf32>
    %c2_104 = arith.constant 2 : index
    %c0_105 = arith.constant 0 : index
    %159 = memref.load %arg5[%c2_104, %c0_105] : memref<4x2xf32, #tpu.memory_space<smem>>
    %c2_106 = arith.constant 2 : index
    %c0_107 = arith.constant 0 : index
    %160 = memref.load %arg4[%c2_106, %c0_107] : memref<4x8xf32, #tpu.memory_space<smem>>
    %161 = vector.broadcast %160 : f32 to vector<2x128xf32>
    %162 = arith.mulf %161, %6 : vector<2x128xf32>
    %163 = vector.broadcast %159 : f32 to vector<2x128xf32>
    %164 = arith.addf %163, %162 : vector<2x128xf32>
    %c2_108 = arith.constant 2 : index
    %c4_109 = arith.constant 4 : index
    %165 = memref.load %arg4[%c2_108, %c4_109] : memref<4x8xf32, #tpu.memory_space<smem>>
    %166 = vector.broadcast %165 : f32 to vector<2x128xf32>
    %167 = arith.mulf %166, %21 : vector<2x128xf32>
    %168 = arith.addf %164, %167 : vector<2x128xf32>
    %c2_110 = arith.constant 2 : index
    %c1_111 = arith.constant 1 : index
    %169 = memref.load %arg4[%c2_110, %c1_111] : memref<4x8xf32, #tpu.memory_space<smem>>
    %170 = vector.broadcast %169 : f32 to vector<2x128xf32>
    %171 = arith.mulf %170, %8 : vector<2x128xf32>
    %172 = arith.addf %168, %171 : vector<2x128xf32>
    %c2_112 = arith.constant 2 : index
    %c5_113 = arith.constant 5 : index
    %173 = memref.load %arg4[%c2_112, %c5_113] : memref<4x8xf32, #tpu.memory_space<smem>>
    %174 = vector.broadcast %173 : f32 to vector<2x128xf32>
    %175 = arith.mulf %174, %30 : vector<2x128xf32>
    %176 = arith.addf %172, %175 : vector<2x128xf32>
    %c2_114 = arith.constant 2 : index
    %c2_115 = arith.constant 2 : index
    %177 = memref.load %arg4[%c2_114, %c2_115] : memref<4x8xf32, #tpu.memory_space<smem>>
    %178 = vector.broadcast %177 : f32 to vector<2x128xf32>
    %179 = arith.mulf %178, %10 : vector<2x128xf32>
    %180 = arith.addf %176, %179 : vector<2x128xf32>
    %c2_116 = arith.constant 2 : index
    %c6_117 = arith.constant 6 : index
    %181 = memref.load %arg4[%c2_116, %c6_117] : memref<4x8xf32, #tpu.memory_space<smem>>
    %182 = vector.broadcast %181 : f32 to vector<2x128xf32>
    %183 = arith.mulf %182, %39 : vector<2x128xf32>
    %184 = arith.addf %180, %183 : vector<2x128xf32>
    %c2_118 = arith.constant 2 : index
    %c3_119 = arith.constant 3 : index
    %185 = memref.load %arg4[%c2_118, %c3_119] : memref<4x8xf32, #tpu.memory_space<smem>>
    %186 = vector.broadcast %185 : f32 to vector<2x128xf32>
    %187 = arith.mulf %186, %12 : vector<2x128xf32>
    %188 = arith.addf %184, %187 : vector<2x128xf32>
    %c2_120 = arith.constant 2 : index
    %c7_121 = arith.constant 7 : index
    %189 = memref.load %arg4[%c2_120, %c7_121] : memref<4x8xf32, #tpu.memory_space<smem>>
    %190 = vector.broadcast %189 : f32 to vector<2x128xf32>
    %191 = arith.mulf %190, %48 : vector<2x128xf32>
    %192 = arith.addf %188, %191 : vector<2x128xf32>
    %193 = vector.broadcast %3 : f32 to vector<2x128xf32>
    %194 = arith.mulf %193, %39 : vector<2x128xf32>
    %195 = vector.broadcast %4 : f32 to vector<2x128xf32>
    %196 = arith.mulf %195, %192 : vector<2x128xf32>
    %197 = arith.subf %194, %196 : vector<2x128xf32>
    %cst_122 = arith.constant -1.000000e+00 : f32
    %cst_123 = arith.constant 1.000000e+00 : f32
    %198 = vector.broadcast %cst_122 : f32 to vector<2x128xf32>
    %199 = arith.maximumf %198, %197 : vector<2x128xf32>
    %200 = vector.broadcast %cst_123 : f32 to vector<2x128xf32>
    %201 = arith.minimumf %200, %199 : vector<2x128xf32>
    %cst_124 = arith.constant 1.000000e+00 : f32
    %202 = vector.broadcast %cst_124 : f32 to vector<2x128xf32>
    %203 = arith.addf %201, %202 : vector<2x128xf32>
    %cst_125 = arith.constant 5.000000e-01 : f32
    %204 = vector.broadcast %cst_125 : f32 to vector<2x128xf32>
    %205 = arith.mulf %203, %204 : vector<2x128xf32>
    %c0_126 = arith.constant 0 : index
    %c2_127 = arith.constant 2 : index
    %c0_128 = arith.constant 0 : index
    %c0_129 = arith.constant 0 : index
    %206 = vector.load %arg10[%c0_126, %c2_127, %c0_128, %c0_129] : memref<2x4x2x128xf32, #tpu.memory_space<vmem>>, vector<1x1x2x128xf32>
    %207 = vector.shape_cast %206 : vector<1x1x2x128xf32> to vector<2x128xf32>
    %208 = vector.shape_cast %205 : vector<2x128xf32> to vector<1x1x2x128xf32>
    tpu.vector_store %arg10[%c0_126, %c2_127, %c0_128, %c0_129], %208 {strides = array<i32>} : memref<2x4x2x128xf32, #tpu.memory_space<vmem>>, vector<1x1x2x128xf32>,
    %c0_130 = arith.constant 0 : index
    %c2_131 = arith.constant 2 : index
    %c0_132 = arith.constant 0 : index
    %c0_133 = arith.constant 0 : index
    %209 = vector.load %arg3[%c0_130, %c2_131, %c0_132, %c0_133] : memref<2x4x2x128xf32, #tpu.memory_space<vmem>>, vector<1x1x2x128xf32>
    %210 = vector.shape_cast %209 : vector<1x1x2x128xf32> to vector<2x128xf32>
    %211 = arith.subf %210, %192 : vector<2x128xf32>
    %212 = math.absf %211 : vector<2x128xf32>
    %213 = arith.addf %158, %212 : vector<2x128xf32>
    %c3_134 = arith.constant 3 : index
    %c0_135 = arith.constant 0 : index
    %214 = memref.load %arg5[%c3_134, %c0_135] : memref<4x2xf32, #tpu.memory_space<smem>>
    %c3_136 = arith.constant 3 : index
    %c0_137 = arith.constant 0 : index
    %215 = memref.load %arg4[%c3_136, %c0_137] : memref<4x8xf32, #tpu.memory_space<smem>>
    %216 = vector.broadcast %215 : f32 to vector<2x128xf32>
    %217 = arith.mulf %216, %6 : vector<2x128xf32>
    %218 = vector.broadcast %214 : f32 to vector<2x128xf32>
    %219 = arith.addf %218, %217 : vector<2x128xf32>
    %c3_138 = arith.constant 3 : index
    %c4_139 = arith.constant 4 : index
    %220 = memref.load %arg4[%c3_138, %c4_139] : memref<4x8xf32, #tpu.memory_space<smem>>
    %221 = vector.broadcast %220 : f32 to vector<2x128xf32>
    %222 = arith.mulf %221, %21 : vector<2x128xf32>
    %223 = arith.addf %219, %222 : vector<2x128xf32>
    %c3_140 = arith.constant 3 : index
    %c1_141 = arith.constant 1 : index
    %224 = memref.load %arg4[%c3_140, %c1_141] : memref<4x8xf32, #tpu.memory_space<smem>>
    %225 = vector.broadcast %224 : f32 to vector<2x128xf32>
    %226 = arith.mulf %225, %8 : vector<2x128xf32>
    %227 = arith.addf %223, %226 : vector<2x128xf32>
    %c3_142 = arith.constant 3 : index
    %c5_143 = arith.constant 5 : index
    %228 = memref.load %arg4[%c3_142, %c5_143] : memref<4x8xf32, #tpu.memory_space<smem>>
    %229 = vector.broadcast %228 : f32 to vector<2x128xf32>
    %230 = arith.mulf %229, %30 : vector<2x128xf32>
    %231 = arith.addf %227, %230 : vector<2x128xf32>
    %c3_144 = arith.constant 3 : index
    %c2_145 = arith.constant 2 : index
    %232 = memref.load %arg4[%c3_144, %c2_145] : memref<4x8xf32, #tpu.memory_space<smem>>
    %233 = vector.broadcast %232 : f32 to vector<2x128xf32>
    %234 = arith.mulf %233, %10 : vector<2x128xf32>
    %235 = arith.addf %231, %234 : vector<2x128xf32>
    %c3_146 = arith.constant 3 : index
    %c6_147 = arith.constant 6 : index
    %236 = memref.load %arg4[%c3_146, %c6_147] : memref<4x8xf32, #tpu.memory_space<smem>>
    %237 = vector.broadcast %236 : f32 to vector<2x128xf32>
    %238 = arith.mulf %237, %39 : vector<2x128xf32>
    %239 = arith.addf %235, %238 : vector<2x128xf32>
    %c3_148 = arith.constant 3 : index
    %c3_149 = arith.constant 3 : index
    %240 = memref.load %arg4[%c3_148, %c3_149] : memref<4x8xf32, #tpu.memory_space<smem>>
    %241 = vector.broadcast %240 : f32 to vector<2x128xf32>
    %242 = arith.mulf %241, %12 : vector<2x128xf32>
    %243 = arith.addf %239, %242 : vector<2x128xf32>
    %c3_150 = arith.constant 3 : index
    %c7_151 = arith.constant 7 : index
    %244 = memref.load %arg4[%c3_150, %c7_151] : memref<4x8xf32, #tpu.memory_space<smem>>
    %245 = vector.broadcast %244 : f32 to vector<2x128xf32>
    %246 = arith.mulf %245, %48 : vector<2x128xf32>
    %247 = arith.addf %243, %246 : vector<2x128xf32>
    %248 = vector.broadcast %3 : f32 to vector<2x128xf32>
    %249 = arith.mulf %248, %48 : vector<2x128xf32>
    %250 = vector.broadcast %4 : f32 to vector<2x128xf32>
    %251 = arith.mulf %250, %247 : vector<2x128xf32>
    %252 = arith.subf %249, %251 : vector<2x128xf32>
    %cst_152 = arith.constant -1.000000e+00 : f32
    %cst_153 = arith.constant 1.000000e+00 : f32
    %253 = vector.broadcast %cst_152 : f32 to vector<2x128xf32>
    %254 = arith.maximumf %253, %252 : vector<2x128xf32>
    %255 = vector.broadcast %cst_153 : f32 to vector<2x128xf32>
    %256 = arith.minimumf %255, %254 : vector<2x128xf32>
    %cst_154 = arith.constant 1.000000e+00 : f32
    %257 = vector.broadcast %cst_154 : f32 to vector<2x128xf32>
    %258 = arith.addf %256, %257 : vector<2x128xf32>
    %cst_155 = arith.constant 5.000000e-01 : f32
    %259 = vector.broadcast %cst_155 : f32 to vector<2x128xf32>
    %260 = arith.mulf %258, %259 : vector<2x128xf32>
    %c0_156 = arith.constant 0 : index
    %c3_157 = arith.constant 3 : index
    %c0_158 = arith.constant 0 : index
    %c0_159 = arith.constant 0 : index
    %261 = vector.load %arg10[%c0_156, %c3_157, %c0_158, %c0_159] : memref<2x4x2x128xf32, #tpu.memory_space<vmem>>, vector<1x1x2x128xf32>
    %262 = vector.shape_cast %261 : vector<1x1x2x128xf32> to vector<2x128xf32>
    %263 = vector.shape_cast %260 : vector<2x128xf32> to vector<1x1x2x128xf32>
    tpu.vector_store %arg10[%c0_156, %c3_157, %c0_158, %c0_159], %263 {strides = array<i32>} : memref<2x4x2x128xf32, #tpu.memory_space<vmem>>, vector<1x1x2x128xf32>,
    %c0_160 = arith.constant 0 : index
    %c3_161 = arith.constant 3 : index
    %c0_162 = arith.constant 0 : index
    %c0_163 = arith.constant 0 : index
    %264 = vector.load %arg3[%c0_160, %c3_161, %c0_162, %c0_163] : memref<2x4x2x128xf32, #tpu.memory_space<vmem>>, vector<1x1x2x128xf32>
    %265 = vector.shape_cast %264 : vector<1x1x2x128xf32> to vector<2x128xf32>
    %266 = arith.subf %265, %247 : vector<2x128xf32>
    %267 = math.absf %266 : vector<2x128xf32>
    %268 = arith.addf %213, %267 : vector<2x128xf32>
    %c1_164 = arith.constant 1 : index
    %269 = memref.load %arg6[%c1_164] : memref<2xf32, #tpu.memory_space<smem>>
    %c1_165 = arith.constant 1 : index
    %270 = memref.load %arg7[%c1_165] : memref<2xf32, #tpu.memory_space<smem>>
    %c1_166 = arith.constant 1 : index
    %271 = memref.load %arg8[%c1_166] : memref<2xf32, #tpu.memory_space<smem>>
    %c1_167 = arith.constant 1 : index
    %272 = memref.load %arg9[%c1_167] : memref<2xf32, #tpu.memory_space<smem>>
    %c1_168 = arith.constant 1 : index
    %c0_169 = arith.constant 0 : index
    %c0_170 = arith.constant 0 : index
    %c0_171 = arith.constant 0 : index
    %273 = vector.load %arg2[%c1_168, %c0_169, %c0_170, %c0_171] : memref<2x4x2x128xf32, #tpu.memory_space<vmem>>, vector<1x1x2x128xf32>
    %274 = vector.shape_cast %273 : vector<1x1x2x128xf32> to vector<2x128xf32>
    %c1_172 = arith.constant 1 : index
    %c1_173 = arith.constant 1 : index
    %c0_174 = arith.constant 0 : index
    %c0_175 = arith.constant 0 : index
    %275 = vector.load %arg2[%c1_172, %c1_173, %c0_174, %c0_175] : memref<2x4x2x128xf32, #tpu.memory_space<vmem>>, vector<1x1x2x128xf32>
    %276 = vector.shape_cast %275 : vector<1x1x2x128xf32> to vector<2x128xf32>
    %c1_176 = arith.constant 1 : index
    %c2_177 = arith.constant 2 : index
    %c0_178 = arith.constant 0 : index
    %c0_179 = arith.constant 0 : index
    %277 = vector.load %arg2[%c1_176, %c2_177, %c0_178, %c0_179] : memref<2x4x2x128xf32, #tpu.memory_space<vmem>>, vector<1x1x2x128xf32>
    %278 = vector.shape_cast %277 : vector<1x1x2x128xf32> to vector<2x128xf32>
    %c1_180 = arith.constant 1 : index
    %c3_181 = arith.constant 3 : index
    %c0_182 = arith.constant 0 : index
    %c0_183 = arith.constant 0 : index
    %279 = vector.load %arg2[%c1_180, %c3_181, %c0_182, %c0_183] : memref<2x4x2x128xf32, #tpu.memory_space<vmem>>, vector<1x1x2x128xf32>
    %280 = vector.shape_cast %279 : vector<1x1x2x128xf32> to vector<2x128xf32>
    %c1_184 = arith.constant 1 : index
    %c0_185 = arith.constant 0 : index
    %c0_186 = arith.constant 0 : index
    %c0_187 = arith.constant 0 : index
    %281 = vector.load %arg1[%c1_184, %c0_185, %c0_186, %c0_187] : memref<2x4x2x128xf32, #tpu.memory_space<vmem>>, vector<1x1x2x128xf32>
    %282 = vector.shape_cast %281 : vector<1x1x2x128xf32> to vector<2x128xf32>
    %283 = vector.broadcast %269 : f32 to vector<2x128xf32>
    %284 = arith.mulf %283, %282 : vector<2x128xf32>
    %c1_188 = arith.constant 1 : index
    %c0_189 = arith.constant 0 : index
    %c0_190 = arith.constant 0 : index
    %c0_191 = arith.constant 0 : index
    %285 = vector.load %arg3[%c1_188, %c0_189, %c0_190, %c0_191] : memref<2x4x2x128xf32, #tpu.memory_space<vmem>>, vector<1x1x2x128xf32>
    %286 = vector.shape_cast %285 : vector<1x1x2x128xf32> to vector<2x128xf32>
    %287 = vector.broadcast %270 : f32 to vector<2x128xf32>
    %288 = arith.mulf %287, %286 : vector<2x128xf32>
    %289 = arith.addf %284, %288 : vector<2x128xf32>
    %c1_192 = arith.constant 1 : index
    %c1_193 = arith.constant 1 : index
    %c0_194 = arith.constant 0 : index
    %c0_195 = arith.constant 0 : index
    %290 = vector.load %arg1[%c1_192, %c1_193, %c0_194, %c0_195] : memref<2x4x2x128xf32, #tpu.memory_space<vmem>>, vector<1x1x2x128xf32>
    %291 = vector.shape_cast %290 : vector<1x1x2x128xf32> to vector<2x128xf32>
    %292 = vector.broadcast %269 : f32 to vector<2x128xf32>
    %293 = arith.mulf %292, %291 : vector<2x128xf32>
    %c1_196 = arith.constant 1 : index
    %c1_197 = arith.constant 1 : index
    %c0_198 = arith.constant 0 : index
    %c0_199 = arith.constant 0 : index
    %294 = vector.load %arg3[%c1_196, %c1_197, %c0_198, %c0_199] : memref<2x4x2x128xf32, #tpu.memory_space<vmem>>, vector<1x1x2x128xf32>
    %295 = vector.shape_cast %294 : vector<1x1x2x128xf32> to vector<2x128xf32>
    %296 = vector.broadcast %270 : f32 to vector<2x128xf32>
    %297 = arith.mulf %296, %295 : vector<2x128xf32>
    %298 = arith.addf %293, %297 : vector<2x128xf32>
    %c1_200 = arith.constant 1 : index
    %c2_201 = arith.constant 2 : index
    %c0_202 = arith.constant 0 : index
    %c0_203 = arith.constant 0 : index
    %299 = vector.load %arg1[%c1_200, %c2_201, %c0_202, %c0_203] : memref<2x4x2x128xf32, #tpu.memory_space<vmem>>, vector<1x1x2x128xf32>
    %300 = vector.shape_cast %299 : vector<1x1x2x128xf32> to vector<2x128xf32>
    %301 = vector.broadcast %269 : f32 to vector<2x128xf32>
    %302 = arith.mulf %301, %300 : vector<2x128xf32>
    %c1_204 = arith.constant 1 : index
    %c2_205 = arith.constant 2 : index
    %c0_206 = arith.constant 0 : index
    %c0_207 = arith.constant 0 : index
    %303 = vector.load %arg3[%c1_204, %c2_205, %c0_206, %c0_207] : memref<2x4x2x128xf32, #tpu.memory_space<vmem>>, vector<1x1x2x128xf32>
    %304 = vector.shape_cast %303 : vector<1x1x2x128xf32> to vector<2x128xf32>
    %305 = vector.broadcast %270 : f32 to vector<2x128xf32>
    %306 = arith.mulf %305, %304 : vector<2x128xf32>
    %307 = arith.addf %302, %306 : vector<2x128xf32>
    %c1_208 = arith.constant 1 : index
    %c3_209 = arith.constant 3 : index
    %c0_210 = arith.constant 0 : index
    %c0_211 = arith.constant 0 : index
    %308 = vector.load %arg1[%c1_208, %c3_209, %c0_210, %c0_211] : memref<2x4x2x128xf32, #tpu.memory_space<vmem>>, vector<1x1x2x128xf32>
    %309 = vector.shape_cast %308 : vector<1x1x2x128xf32> to vector<2x128xf32>
    %310 = vector.broadcast %269 : f32 to vector<2x128xf32>
    %311 = arith.mulf %310, %309 : vector<2x128xf32>
    %c1_212 = arith.constant 1 : index
    %c3_213 = arith.constant 3 : index
    %c0_214 = arith.constant 0 : index
    %c0_215 = arith.constant 0 : index
    %312 = vector.load %arg3[%c1_212, %c3_213, %c0_214, %c0_215] : memref<2x4x2x128xf32, #tpu.memory_space<vmem>>, vector<1x1x2x128xf32>
    %313 = vector.shape_cast %312 : vector<1x1x2x128xf32> to vector<2x128xf32>
    %314 = vector.broadcast %270 : f32 to vector<2x128xf32>
    %315 = arith.mulf %314, %313 : vector<2x128xf32>
    %316 = arith.addf %311, %315 : vector<2x128xf32>
    %c0_216 = arith.constant 0 : index
    %c1_217 = arith.constant 1 : index
    %317 = memref.load %arg5[%c0_216, %c1_217] : memref<4x2xf32, #tpu.memory_space<smem>>
    %c0_218 = arith.constant 0 : index
    %c0_219 = arith.constant 0 : index
    %318 = memref.load %arg4[%c0_218, %c0_219] : memref<4x8xf32, #tpu.memory_space<smem>>
    %319 = vector.broadcast %318 : f32 to vector<2x128xf32>
    %320 = arith.mulf %319, %274 : vector<2x128xf32>
    %321 = vector.broadcast %317 : f32 to vector<2x128xf32>
    %322 = arith.addf %321, %320 : vector<2x128xf32>
    %c0_220 = arith.constant 0 : index
    %c4_221 = arith.constant 4 : index
    %323 = memref.load %arg4[%c0_220, %c4_221] : memref<4x8xf32, #tpu.memory_space<smem>>
    %324 = vector.broadcast %323 : f32 to vector<2x128xf32>
    %325 = arith.mulf %324, %289 : vector<2x128xf32>
    %326 = arith.addf %322, %325 : vector<2x128xf32>
    %c0_222 = arith.constant 0 : index
    %c1_223 = arith.constant 1 : index
    %327 = memref.load %arg4[%c0_222, %c1_223] : memref<4x8xf32, #tpu.memory_space<smem>>
    %328 = vector.broadcast %327 : f32 to vector<2x128xf32>
    %329 = arith.mulf %328, %276 : vector<2x128xf32>
    %330 = arith.addf %326, %329 : vector<2x128xf32>
    %c0_224 = arith.constant 0 : index
    %c5_225 = arith.constant 5 : index
    %331 = memref.load %arg4[%c0_224, %c5_225] : memref<4x8xf32, #tpu.memory_space<smem>>
    %332 = vector.broadcast %331 : f32 to vector<2x128xf32>
    %333 = arith.mulf %332, %298 : vector<2x128xf32>
    %334 = arith.addf %330, %333 : vector<2x128xf32>
    %c0_226 = arith.constant 0 : index
    %c2_227 = arith.constant 2 : index
    %335 = memref.load %arg4[%c0_226, %c2_227] : memref<4x8xf32, #tpu.memory_space<smem>>
    %336 = vector.broadcast %335 : f32 to vector<2x128xf32>
    %337 = arith.mulf %336, %278 : vector<2x128xf32>
    %338 = arith.addf %334, %337 : vector<2x128xf32>
    %c0_228 = arith.constant 0 : index
    %c6_229 = arith.constant 6 : index
    %339 = memref.load %arg4[%c0_228, %c6_229] : memref<4x8xf32, #tpu.memory_space<smem>>
    %340 = vector.broadcast %339 : f32 to vector<2x128xf32>
    %341 = arith.mulf %340, %307 : vector<2x128xf32>
    %342 = arith.addf %338, %341 : vector<2x128xf32>
    %c0_230 = arith.constant 0 : index
    %c3_231 = arith.constant 3 : index
    %343 = memref.load %arg4[%c0_230, %c3_231] : memref<4x8xf32, #tpu.memory_space<smem>>
    %344 = vector.broadcast %343 : f32 to vector<2x128xf32>
    %345 = arith.mulf %344, %280 : vector<2x128xf32>
    %346 = arith.addf %342, %345 : vector<2x128xf32>
    %c0_232 = arith.constant 0 : index
    %c7_233 = arith.constant 7 : index
    %347 = memref.load %arg4[%c0_232, %c7_233] : memref<4x8xf32, #tpu.memory_space<smem>>
    %348 = vector.broadcast %347 : f32 to vector<2x128xf32>
    %349 = arith.mulf %348, %316 : vector<2x128xf32>
    %350 = arith.addf %346, %349 : vector<2x128xf32>
    %351 = vector.broadcast %271 : f32 to vector<2x128xf32>
    %352 = arith.mulf %351, %289 : vector<2x128xf32>
    %353 = vector.broadcast %272 : f32 to vector<2x128xf32>
    %354 = arith.mulf %353, %350 : vector<2x128xf32>
    %355 = arith.subf %352, %354 : vector<2x128xf32>
    %cst_234 = arith.constant -1.000000e+00 : f32
    %cst_235 = arith.constant 1.000000e+00 : f32
    %356 = vector.broadcast %cst_234 : f32 to vector<2x128xf32>
    %357 = arith.maximumf %356, %355 : vector<2x128xf32>
    %358 = vector.broadcast %cst_235 : f32 to vector<2x128xf32>
    %359 = arith.minimumf %358, %357 : vector<2x128xf32>
    %cst_236 = arith.constant 1.000000e+00 : f32
    %360 = vector.broadcast %cst_236 : f32 to vector<2x128xf32>
    %361 = arith.addf %359, %360 : vector<2x128xf32>
    %cst_237 = arith.constant 5.000000e-01 : f32
    %362 = vector.broadcast %cst_237 : f32 to vector<2x128xf32>
    %363 = arith.mulf %361, %362 : vector<2x128xf32>
    %c1_238 = arith.constant 1 : index
    %c0_239 = arith.constant 0 : index
    %c0_240 = arith.constant 0 : index
    %c0_241 = arith.constant 0 : index
    %364 = vector.load %arg10[%c1_238, %c0_239, %c0_240, %c0_241] : memref<2x4x2x128xf32, #tpu.memory_space<vmem>>, vector<1x1x2x128xf32>
    %365 = vector.shape_cast %364 : vector<1x1x2x128xf32> to vector<2x128xf32>
    %366 = vector.shape_cast %363 : vector<2x128xf32> to vector<1x1x2x128xf32>
    tpu.vector_store %arg10[%c1_238, %c0_239, %c0_240, %c0_241], %366 {strides = array<i32>} : memref<2x4x2x128xf32, #tpu.memory_space<vmem>>, vector<1x1x2x128xf32>,
    %c1_242 = arith.constant 1 : index
    %c0_243 = arith.constant 0 : index
    %c0_244 = arith.constant 0 : index
    %c0_245 = arith.constant 0 : index
    %367 = vector.load %arg3[%c1_242, %c0_243, %c0_244, %c0_245] : memref<2x4x2x128xf32, #tpu.memory_space<vmem>>, vector<1x1x2x128xf32>
    %368 = vector.shape_cast %367 : vector<1x1x2x128xf32> to vector<2x128xf32>
    %369 = arith.subf %368, %350 : vector<2x128xf32>
    %370 = math.absf %369 : vector<2x128xf32>
    %371 = arith.addf %268, %370 : vector<2x128xf32>
    %c1_246 = arith.constant 1 : index
    %c1_247 = arith.constant 1 : index
    %372 = memref.load %arg5[%c1_246, %c1_247] : memref<4x2xf32, #tpu.memory_space<smem>>
    %c1_248 = arith.constant 1 : index
    %c0_249 = arith.constant 0 : index
    %373 = memref.load %arg4[%c1_248, %c0_249] : memref<4x8xf32, #tpu.memory_space<smem>>
    %374 = vector.broadcast %373 : f32 to vector<2x128xf32>
    %375 = arith.mulf %374, %274 : vector<2x128xf32>
    %376 = vector.broadcast %372 : f32 to vector<2x128xf32>
    %377 = arith.addf %376, %375 : vector<2x128xf32>
    %c1_250 = arith.constant 1 : index
    %c4_251 = arith.constant 4 : index
    %378 = memref.load %arg4[%c1_250, %c4_251] : memref<4x8xf32, #tpu.memory_space<smem>>
    %379 = vector.broadcast %378 : f32 to vector<2x128xf32>
    %380 = arith.mulf %379, %289 : vector<2x128xf32>
    %381 = arith.addf %377, %380 : vector<2x128xf32>
    %c1_252 = arith.constant 1 : index
    %c1_253 = arith.constant 1 : index
    %382 = memref.load %arg4[%c1_252, %c1_253] : memref<4x8xf32, #tpu.memory_space<smem>>
    %383 = vector.broadcast %382 : f32 to vector<2x128xf32>
    %384 = arith.mulf %383, %276 : vector<2x128xf32>
    %385 = arith.addf %381, %384 : vector<2x128xf32>
    %c1_254 = arith.constant 1 : index
    %c5_255 = arith.constant 5 : index
    %386 = memref.load %arg4[%c1_254, %c5_255] : memref<4x8xf32, #tpu.memory_space<smem>>
    %387 = vector.broadcast %386 : f32 to vector<2x128xf32>
    %388 = arith.mulf %387, %298 : vector<2x128xf32>
    %389 = arith.addf %385, %388 : vector<2x128xf32>
    %c1_256 = arith.constant 1 : index
    %c2_257 = arith.constant 2 : index
    %390 = memref.load %arg4[%c1_256, %c2_257] : memref<4x8xf32, #tpu.memory_space<smem>>
    %391 = vector.broadcast %390 : f32 to vector<2x128xf32>
    %392 = arith.mulf %391, %278 : vector<2x128xf32>
    %393 = arith.addf %389, %392 : vector<2x128xf32>
    %c1_258 = arith.constant 1 : index
    %c6_259 = arith.constant 6 : index
    %394 = memref.load %arg4[%c1_258, %c6_259] : memref<4x8xf32, #tpu.memory_space<smem>>
    %395 = vector.broadcast %394 : f32 to vector<2x128xf32>
    %396 = arith.mulf %395, %307 : vector<2x128xf32>
    %397 = arith.addf %393, %396 : vector<2x128xf32>
    %c1_260 = arith.constant 1 : index
    %c3_261 = arith.constant 3 : index
    %398 = memref.load %arg4[%c1_260, %c3_261] : memref<4x8xf32, #tpu.memory_space<smem>>
    %399 = vector.broadcast %398 : f32 to vector<2x128xf32>
    %400 = arith.mulf %399, %280 : vector<2x128xf32>
    %401 = arith.addf %397, %400 : vector<2x128xf32>
    %c1_262 = arith.constant 1 : index
    %c7_263 = arith.constant 7 : index
    %402 = memref.load %arg4[%c1_262, %c7_263] : memref<4x8xf32, #tpu.memory_space<smem>>
    %403 = vector.broadcast %402 : f32 to vector<2x128xf32>
    %404 = arith.mulf %403, %316 : vector<2x128xf32>
    %405 = arith.addf %401, %404 : vector<2x128xf32>
    %406 = vector.broadcast %271 : f32 to vector<2x128xf32>
    %407 = arith.mulf %406, %298 : vector<2x128xf32>
    %408 = vector.broadcast %272 : f32 to vector<2x128xf32>
    %409 = arith.mulf %408, %405 : vector<2x128xf32>
    %410 = arith.subf %407, %409 : vector<2x128xf32>
    %cst_264 = arith.constant -1.000000e+00 : f32
    %cst_265 = arith.constant 1.000000e+00 : f32
    %411 = vector.broadcast %cst_264 : f32 to vector<2x128xf32>
    %412 = arith.maximumf %411, %410 : vector<2x128xf32>
    %413 = vector.broadcast %cst_265 : f32 to vector<2x128xf32>
    %414 = arith.minimumf %413, %412 : vector<2x128xf32>
    %cst_266 = arith.constant 1.000000e+00 : f32
    %415 = vector.broadcast %cst_266 : f32 to vector<2x128xf32>
    %416 = arith.addf %414, %415 : vector<2x128xf32>
    %cst_267 = arith.constant 5.000000e-01 : f32
    %417 = vector.broadcast %cst_267 : f32 to vector<2x128xf32>
    %418 = arith.mulf %416, %417 : vector<2x128xf32>
    %c1_268 = arith.constant 1 : index
    %c1_269 = arith.constant 1 : index
    %c0_270 = arith.constant 0 : index
    %c0_271 = arith.constant 0 : index
    %419 = vector.load %arg10[%c1_268, %c1_269, %c0_270, %c0_271] : memref<2x4x2x128xf32, #tpu.memory_space<vmem>>, vector<1x1x2x128xf32>
    %420 = vector.shape_cast %419 : vector<1x1x2x128xf32> to vector<2x128xf32>
    %421 = vector.shape_cast %418 : vector<2x128xf32> to vector<1x1x2x128xf32>
    tpu.vector_store %arg10[%c1_268, %c1_269, %c0_270, %c0_271], %421 {strides = array<i32>} : memref<2x4x2x128xf32, #tpu.memory_space<vmem>>, vector<1x1x2x128xf32>,
    %c1_272 = arith.constant 1 : index
    %c1_273 = arith.constant 1 : index
    %c0_274 = arith.constant 0 : index
    %c0_275 = arith.constant 0 : index
    %422 = vector.load %arg3[%c1_272, %c1_273, %c0_274, %c0_275] : memref<2x4x2x128xf32, #tpu.memory_space<vmem>>, vector<1x1x2x128xf32>
    %423 = vector.shape_cast %422 : vector<1x1x2x128xf32> to vector<2x128xf32>
    %424 = arith.subf %423, %405 : vector<2x128xf32>
    %425 = math.absf %424 : vector<2x128xf32>
    %426 = arith.addf %371, %425 : vector<2x128xf32>
    %c2_276 = arith.constant 2 : index
    %c1_277 = arith.constant 1 : index
    %427 = memref.load %arg5[%c2_276, %c1_277] : memref<4x2xf32, #tpu.memory_space<smem>>
    %c2_278 = arith.constant 2 : index
    %c0_279 = arith.constant 0 : index
    %428 = memref.load %arg4[%c2_278, %c0_279] : memref<4x8xf32, #tpu.memory_space<smem>>
    %429 = vector.broadcast %428 : f32 to vector<2x128xf32>
    %430 = arith.mulf %429, %274 : vector<2x128xf32>
    %431 = vector.broadcast %427 : f32 to vector<2x128xf32>
    %432 = arith.addf %431, %430 : vector<2x128xf32>
    %c2_280 = arith.constant 2 : index
    %c4_281 = arith.constant 4 : index
    %433 = memref.load %arg4[%c2_280, %c4_281] : memref<4x8xf32, #tpu.memory_space<smem>>
    %434 = vector.broadcast %433 : f32 to vector<2x128xf32>
    %435 = arith.mulf %434, %289 : vector<2x128xf32>
    %436 = arith.addf %432, %435 : vector<2x128xf32>
    %c2_282 = arith.constant 2 : index
    %c1_283 = arith.constant 1 : index
    %437 = memref.load %arg4[%c2_282, %c1_283] : memref<4x8xf32, #tpu.memory_space<smem>>
    %438 = vector.broadcast %437 : f32 to vector<2x128xf32>
    %439 = arith.mulf %438, %276 : vector<2x128xf32>
    %440 = arith.addf %436, %439 : vector<2x128xf32>
    %c2_284 = arith.constant 2 : index
    %c5_285 = arith.constant 5 : index
    %441 = memref.load %arg4[%c2_284, %c5_285] : memref<4x8xf32, #tpu.memory_space<smem>>
    %442 = vector.broadcast %441 : f32 to vector<2x128xf32>
    %443 = arith.mulf %442, %298 : vector<2x128xf32>
    %444 = arith.addf %440, %443 : vector<2x128xf32>
    %c2_286 = arith.constant 2 : index
    %c2_287 = arith.constant 2 : index
    %445 = memref.load %arg4[%c2_286, %c2_287] : memref<4x8xf32, #tpu.memory_space<smem>>
    %446 = vector.broadcast %445 : f32 to vector<2x128xf32>
    %447 = arith.mulf %446, %278 : vector<2x128xf32>
    %448 = arith.addf %444, %447 : vector<2x128xf32>
    %c2_288 = arith.constant 2 : index
    %c6_289 = arith.constant 6 : index
    %449 = memref.load %arg4[%c2_288, %c6_289] : memref<4x8xf32, #tpu.memory_space<smem>>
    %450 = vector.broadcast %449 : f32 to vector<2x128xf32>
    %451 = arith.mulf %450, %307 : vector<2x128xf32>
    %452 = arith.addf %448, %451 : vector<2x128xf32>
    %c2_290 = arith.constant 2 : index
    %c3_291 = arith.constant 3 : index
    %453 = memref.load %arg4[%c2_290, %c3_291] : memref<4x8xf32, #tpu.memory_space<smem>>
    %454 = vector.broadcast %453 : f32 to vector<2x128xf32>
    %455 = arith.mulf %454, %280 : vector<2x128xf32>
    %456 = arith.addf %452, %455 : vector<2x128xf32>
    %c2_292 = arith.constant 2 : index
    %c7_293 = arith.constant 7 : index
    %457 = memref.load %arg4[%c2_292, %c7_293] : memref<4x8xf32, #tpu.memory_space<smem>>
    %458 = vector.broadcast %457 : f32 to vector<2x128xf32>
    %459 = arith.mulf %458, %316 : vector<2x128xf32>
    %460 = arith.addf %456, %459 : vector<2x128xf32>
    %461 = vector.broadcast %271 : f32 to vector<2x128xf32>
    %462 = arith.mulf %461, %307 : vector<2x128xf32>
    %463 = vector.broadcast %272 : f32 to vector<2x128xf32>
    %464 = arith.mulf %463, %460 : vector<2x128xf32>
    %465 = arith.subf %462, %464 : vector<2x128xf32>
    %cst_294 = arith.constant -1.000000e+00 : f32
    %cst_295 = arith.constant 1.000000e+00 : f32
    %466 = vector.broadcast %cst_294 : f32 to vector<2x128xf32>
    %467 = arith.maximumf %466, %465 : vector<2x128xf32>
    %468 = vector.broadcast %cst_295 : f32 to vector<2x128xf32>
    %469 = arith.minimumf %468, %467 : vector<2x128xf32>
    %cst_296 = arith.constant 1.000000e+00 : f32
    %470 = vector.broadcast %cst_296 : f32 to vector<2x128xf32>
    %471 = arith.addf %469, %470 : vector<2x128xf32>
    %cst_297 = arith.constant 5.000000e-01 : f32
    %472 = vector.broadcast %cst_297 : f32 to vector<2x128xf32>
    %473 = arith.mulf %471, %472 : vector<2x128xf32>
    %c1_298 = arith.constant 1 : index
    %c2_299 = arith.constant 2 : index
    %c0_300 = arith.constant 0 : index
    %c0_301 = arith.constant 0 : index
    %474 = vector.load %arg10[%c1_298, %c2_299, %c0_300, %c0_301] : memref<2x4x2x128xf32, #tpu.memory_space<vmem>>, vector<1x1x2x128xf32>
    %475 = vector.shape_cast %474 : vector<1x1x2x128xf32> to vector<2x128xf32>
    %476 = vector.shape_cast %473 : vector<2x128xf32> to vector<1x1x2x128xf32>
    tpu.vector_store %arg10[%c1_298, %c2_299, %c0_300, %c0_301], %476 {strides = array<i32>} : memref<2x4x2x128xf32, #tpu.memory_space<vmem>>, vector<1x1x2x128xf32>,
    %c1_302 = arith.constant 1 : index
    %c2_303 = arith.constant 2 : index
    %c0_304 = arith.constant 0 : index
    %c0_305 = arith.constant 0 : index
    %477 = vector.load %arg3[%c1_302, %c2_303, %c0_304, %c0_305] : memref<2x4x2x128xf32, #tpu.memory_space<vmem>>, vector<1x1x2x128xf32>
    %478 = vector.shape_cast %477 : vector<1x1x2x128xf32> to vector<2x128xf32>
    %479 = arith.subf %478, %460 : vector<2x128xf32>
    %480 = math.absf %479 : vector<2x128xf32>
    %481 = arith.addf %426, %480 : vector<2x128xf32>
    %c3_306 = arith.constant 3 : index
    %c1_307 = arith.constant 1 : index
    %482 = memref.load %arg5[%c3_306, %c1_307] : memref<4x2xf32, #tpu.memory_space<smem>>
    %c3_308 = arith.constant 3 : index
    %c0_309 = arith.constant 0 : index
    %483 = memref.load %arg4[%c3_308, %c0_309] : memref<4x8xf32, #tpu.memory_space<smem>>
    %484 = vector.broadcast %483 : f32 to vector<2x128xf32>
    %485 = arith.mulf %484, %274 : vector<2x128xf32>
    %486 = vector.broadcast %482 : f32 to vector<2x128xf32>
    %487 = arith.addf %486, %485 : vector<2x128xf32>
    %c3_310 = arith.constant 3 : index
    %c4_311 = arith.constant 4 : index
    %488 = memref.load %arg4[%c3_310, %c4_311] : memref<4x8xf32, #tpu.memory_space<smem>>
    %489 = vector.broadcast %488 : f32 to vector<2x128xf32>
    %490 = arith.mulf %489, %289 : vector<2x128xf32>
    %491 = arith.addf %487, %490 : vector<2x128xf32>
    %c3_312 = arith.constant 3 : index
    %c1_313 = arith.constant 1 : index
    %492 = memref.load %arg4[%c3_312, %c1_313] : memref<4x8xf32, #tpu.memory_space<smem>>
    %493 = vector.broadcast %492 : f32 to vector<2x128xf32>
    %494 = arith.mulf %493, %276 : vector<2x128xf32>
    %495 = arith.addf %491, %494 : vector<2x128xf32>
    %c3_314 = arith.constant 3 : index
    %c5_315 = arith.constant 5 : index
    %496 = memref.load %arg4[%c3_314, %c5_315] : memref<4x8xf32, #tpu.memory_space<smem>>
    %497 = vector.broadcast %496 : f32 to vector<2x128xf32>
    %498 = arith.mulf %497, %298 : vector<2x128xf32>
    %499 = arith.addf %495, %498 : vector<2x128xf32>
    %c3_316 = arith.constant 3 : index
    %c2_317 = arith.constant 2 : index
    %500 = memref.load %arg4[%c3_316, %c2_317] : memref<4x8xf32, #tpu.memory_space<smem>>
    %501 = vector.broadcast %500 : f32 to vector<2x128xf32>
    %502 = arith.mulf %501, %278 : vector<2x128xf32>
    %503 = arith.addf %499, %502 : vector<2x128xf32>
    %c3_318 = arith.constant 3 : index
    %c6_319 = arith.constant 6 : index
    %504 = memref.load %arg4[%c3_318, %c6_319] : memref<4x8xf32, #tpu.memory_space<smem>>
    %505 = vector.broadcast %504 : f32 to vector<2x128xf32>
    %506 = arith.mulf %505, %307 : vector<2x128xf32>
    %507 = arith.addf %503, %506 : vector<2x128xf32>
    %c3_320 = arith.constant 3 : index
    %c3_321 = arith.constant 3 : index
    %508 = memref.load %arg4[%c3_320, %c3_321] : memref<4x8xf32, #tpu.memory_space<smem>>
    %509 = vector.broadcast %508 : f32 to vector<2x128xf32>
    %510 = arith.mulf %509, %280 : vector<2x128xf32>
    %511 = arith.addf %507, %510 : vector<2x128xf32>
    %c3_322 = arith.constant 3 : index
    %c7_323 = arith.constant 7 : index
    %512 = memref.load %arg4[%c3_322, %c7_323] : memref<4x8xf32, #tpu.memory_space<smem>>
    %513 = vector.broadcast %512 : f32 to vector<2x128xf32>
    %514 = arith.mulf %513, %316 : vector<2x128xf32>
    %515 = arith.addf %511, %514 : vector<2x128xf32>
    %516 = vector.broadcast %271 : f32 to vector<2x128xf32>
    %517 = arith.mulf %516, %316 : vector<2x128xf32>
    %518 = vector.broadcast %272 : f32 to vector<2x128xf32>
    %519 = arith.mulf %518, %515 : vector<2x128xf32>
    %520 = arith.subf %517, %519 : vector<2x128xf32>
    %cst_324 = arith.constant -1.000000e+00 : f32
    %cst_325 = arith.constant 1.000000e+00 : f32
    %521 = vector.broadcast %cst_324 : f32 to vector<2x128xf32>
    %522 = arith.maximumf %521, %520 : vector<2x128xf32>
    %523 = vector.broadcast %cst_325 : f32 to vector<2x128xf32>
    %524 = arith.minimumf %523, %522 : vector<2x128xf32>
    %cst_326 = arith.constant 1.000000e+00 : f32
    %525 = vector.broadcast %cst_326 : f32 to vector<2x128xf32>
    %526 = arith.addf %524, %525 : vector<2x128xf32>
    %cst_327 = arith.constant 5.000000e-01 : f32
    %527 = vector.broadcast %cst_327 : f32 to vector<2x128xf32>
    %528 = arith.mulf %526, %527 : vector<2x128xf32>
    %c1_328 = arith.constant 1 : index
    %c3_329 = arith.constant 3 : index
    %c0_330 = arith.constant 0 : index
    %c0_331 = arith.constant 0 : index
    %529 = vector.load %arg10[%c1_328, %c3_329, %c0_330, %c0_331] : memref<2x4x2x128xf32, #tpu.memory_space<vmem>>, vector<1x1x2x128xf32>
    %530 = vector.shape_cast %529 : vector<1x1x2x128xf32> to vector<2x128xf32>
    %531 = vector.shape_cast %528 : vector<2x128xf32> to vector<1x1x2x128xf32>
    tpu.vector_store %arg10[%c1_328, %c3_329, %c0_330, %c0_331], %531 {strides = array<i32>} : memref<2x4x2x128xf32, #tpu.memory_space<vmem>>, vector<1x1x2x128xf32>,
    %c1_332 = arith.constant 1 : index
    %c3_333 = arith.constant 3 : index
    %c0_334 = arith.constant 0 : index
    %c0_335 = arith.constant 0 : index
    %532 = vector.load %arg3[%c1_332, %c3_333, %c0_334, %c0_335] : memref<2x4x2x128xf32, #tpu.memory_space<vmem>>, vector<1x1x2x128xf32>
    %533 = vector.shape_cast %532 : vector<1x1x2x128xf32> to vector<2x128xf32>
    %534 = arith.subf %533, %515 : vector<2x128xf32>
    %535 = math.absf %534 : vector<2x128xf32>
    %536 = arith.addf %481, %535 : vector<2x128xf32>
    %537 = vector.shape_cast %536 : vector<2x128xf32> to vector<1x2x128xf32>
    %c0_336 = arith.constant 0 : index
    %c0_337 = arith.constant 0 : index
    %c0_338 = arith.constant 0 : index
    %538 = vector.load %arg11[%c0_336, %c0_337, %c0_338] : memref<1x2x128xf32, #tpu.memory_space<vmem>>, vector<1x2x128xf32>
    tpu.vector_store %arg11[%c0_336, %c0_337, %c0_338], %537 {strides = array<i32>} : memref<1x2x128xf32, #tpu.memory_space<vmem>>, vector<1x2x128xf32>,
    return
  }
  func.func @transform_0(%arg0: i32) -> (i32, i32, i32, i32) {
    %c0_i32 = arith.constant 0 : i32
    %c0_i32_0 = arith.constant 0 : i32
    %c0_i32_1 = arith.constant 0 : i32
    %c0_i32_2 = arith.constant 0 : i32
    return %c0_i32, %c0_i32_0, %arg0, %c0_i32_1 : i32, i32, i32, i32
  }
  func.func @transform_1(%arg0: i32) -> (i32, i32, i32, i32) {
    %c0_i32 = arith.constant 0 : i32
    %c0_i32_0 = arith.constant 0 : i32
    %c0_i32_1 = arith.constant 0 : i32
    %c0_i32_2 = arith.constant 0 : i32
    return %c0_i32, %c0_i32_0, %arg0, %c0_i32_1 : i32, i32, i32, i32
  }
  func.func @transform_2(%arg0: i32) -> (i32, i32, i32, i32) {
    %c0_i32 = arith.constant 0 : i32
    %c0_i32_0 = arith.constant 0 : i32
    %c0_i32_1 = arith.constant 0 : i32
    %c0_i32_2 = arith.constant 0 : i32
    return %c0_i32, %c0_i32_0, %arg0, %c0_i32_1 : i32, i32, i32, i32
  }
  func.func @transform_3(%arg0: i32) -> (i32, i32) {
    %c0_i32 = arith.constant 0 : i32
    %c0_i32_0 = arith.constant 0 : i32
    %c0_i32_1 = arith.constant 0 : i32
    return %c0_i32, %c0_i32_0 : i32, i32
  }
  func.func @transform_4(%arg0: i32) -> (i32, i32) {
    %c0_i32 = arith.constant 0 : i32
    %c0_i32_0 = arith.constant 0 : i32
    %c0_i32_1 = arith.constant 0 : i32
    return %c0_i32, %c0_i32_0 : i32, i32
  }
  func.func @transform_5(%arg0: i32) -> i32 {
    %c0_i32 = arith.constant 0 : i32
    %c0_i32_0 = arith.constant 0 : i32
    return %c0_i32 : i32
  }
  func.func @transform_6(%arg0: i32) -> i32 {
    %c0_i32 = arith.constant 0 : i32
    %c0_i32_0 = arith.constant 0 : i32
    return %c0_i32 : i32
  }
  func.func @transform_7(%arg0: i32) -> i32 {
    %c0_i32 = arith.constant 0 : i32
    %c0_i32_0 = arith.constant 0 : i32
    return %c0_i32 : i32
  }
  func.func @transform_8(%arg0: i32) -> i32 {
    %c0_i32 = arith.constant 0 : i32
    %c0_i32_0 = arith.constant 0 : i32
    return %c0_i32 : i32
  }
  func.func @transform_9(%arg0: i32) -> (i32, i32, i32, i32) {
    %c0_i32 = arith.constant 0 : i32
    %c0_i32_0 = arith.constant 0 : i32
    %c0_i32_1 = arith.constant 0 : i32
    %c0_i32_2 = arith.constant 0 : i32
    return %c0_i32, %c0_i32_0, %arg0, %c0_i32_1 : i32, i32, i32, i32
  }
  func.func @transform_10(%arg0: i32) -> (i32, i32, i32) {
    %c0_i32 = arith.constant 0 : i32
    %c0_i32_0 = arith.constant 0 : i32
    %c0_i32_1 = arith.constant 0 : i32
    return %arg0, %c0_i32, %c0_i32_0 : i32, i32, i32
  }
}

</mosaic_0001>

<llo_original>
// kernel: tpu_custom_call.1
$region0: #{tpu_custom_call.1}
  #allocation0 [shape = 'u32[]', space=smem, size = 0x4, offset = 0x4, fixed_abs, tag = 'smem constant byte address 0x4 - core index']
  #allocation1 [shape = 'u32[72,128]{1,0:T(1,128)}', space=vmem, size = 0x9000, scoped, tag = 'internal scratch']
  %s0 = inlined_call_operand.hbm [shape: f32[2,4,2,128], index: 0, kind: input, shape index: {}]
  %s1 = inlined_call_operand.hbm [shape: f32[2,4,2,128], index: 1, kind: input, shape index: {}]
  %s2 = inlined_call_operand.hbm [shape: f32[2,4,2,128], index: 2, kind: input, shape index: {}]
  %s3 = inlined_call_operand.vmem [shape: f32[4,8], index: 3, kind: input, shape index: {}]
  %s4 = inlined_call_operand.vmem [shape: f32[4,2], index: 4, kind: input, shape index: {}]
  %s5 = inlined_call_operand.vmem [shape: f32[2], index: 5, kind: input, shape index: {}]
  %s6 = inlined_call_operand.vmem [shape: f32[2], index: 6, kind: input, shape index: {}]
  %s7 = inlined_call_operand.vmem [shape: f32[2], index: 7, kind: input, shape index: {}]
  %s8 = inlined_call_operand.vmem [shape: f32[2], index: 8, kind: input, shape index: {}]
  %s9 = inlined_call_operand.hbm [shape: f32[2,4,2,128], index: 9, kind: output, shape index: {0}]
  %s10 = inlined_call_operand.hbm [shape: f32[1,2,128], index: 10, kind: output, shape index: {1}]
  %11 = xla_tuple %s9, %s10
  %s12 = sld [smem:[#allocation0]]
  $region90: #{tpu_custom_call.1} parent=0
    _
  %s14 = ssub.s32 1, %s12
  %s15 = scalar_select 0, %s14, %s12
  $region1: #{tpu_custom_call.1} parent=0
    #allocation2 [shape = 'u8[8192]{0}', space=vmem, size = 0x2000, scoped, tag = 'input window, operand 0, single buffered']
    #allocation3 [shape = 's32[1]{0}', space=sflag, size = 0x4, scoped, tag = 'scoped memory for tpu_custom_call.1']
    #allocation4 [shape = 's32[1]{0}', space=sflag, size = 0x4, scoped, tag = 'scoped memory for tpu_custom_call.1']
    #allocation5 [shape = 's32[1]{0}', space=sflag, size = 0x4, scoped, tag = 'scoped memory for tpu_custom_call.1']
    #allocation6 [shape = 'u8[8192]{0}', space=vmem, size = 0x2000, scoped, tag = 'input window, operand 1, single buffered']
    #allocation7 [shape = 's32[1]{0}', space=sflag, size = 0x4, scoped, tag = 'scoped memory for tpu_custom_call.1']
    #allocation8 [shape = 'u8[8192]{0}', space=vmem, size = 0x2000, scoped, tag = 'input window, operand 2, single buffered']
    #allocation9 [shape = 'u8[2048]{0}', space=smem, size = 0x800, scoped, tag = 'input window, operand 3, single buffered']
    #allocation10 [shape = 'u8[2048]{0}', space=smem, size = 0x800, scoped, tag = 'input window, operand 4, single buffered']
    #allocation11 [shape = 's32[1]{0}', space=sflag, size = 0x4, scoped, tag = 'scoped memory for tpu_custom_call.1']
    #allocation12 [shape = 'u8[512]{0}', space=smem, size = 0x200, scoped, tag = 'input window, operand 5, single buffered']
    #allocation13 [shape = 'u8[512]{0}', space=smem, size = 0x200, scoped, tag = 'input window, operand 6, single buffered']
    #allocation14 [shape = 's32[1]{0}', space=sflag, size = 0x4, scoped, tag = 'scoped memory for tpu_custom_call.1']
    #allocation15 [shape = 'u8[512]{0}', space=smem, size = 0x200, scoped, tag = 'input window, operand 7, single buffered']
    #allocation16 [shape = 'u8[512]{0}', space=smem, size = 0x200, scoped, tag = 'input window, operand 8, single buffered']
    #allocation17 [shape = 's32[1]{0}', space=sflag, size = 0x4, scoped, tag = 'scoped memory for tpu_custom_call.1']
    #allocation18 [shape = 'u8[8192]{0}', space=vmem, size = 0x2000, scoped, tag = 'output window, operand 0, single buffered']
    #allocation19 [shape = 'u8[1024]{0}', space=vmem, size = 0x400, scoped, tag = 'output window, operand 1, single buffered']
    #allocation20 [shape = 's32[1]{0}', space=sflag, size = 0x4, scoped, tag = 'scoped memory for tpu_custom_call.1']
    %16 = vsyncpa [#allocation3], 0
    %17 = vsyncpa [#allocation7], 0
    %18 = vsyncpa [#allocation5], 0
    %19 = vsyncpa [#allocation11], 0
    %20 = vsyncpa [#allocation14], 0
    %21 = vsyncpa [#allocation17], 0
    %22 = vsyncpa [#allocation4], 0
    %23 = vsyncpa [#allocation20], 0
    // Predicated region
    $region2: #{tpu_custom_call.1} parent=1 // pred_check
      _
    $region3: #{tpu_custom_call.1} parent=1 // pred_check_branch
      %25 = sbr.rel (0) target = $region5
    $region4: #{tpu_custom_call.1} parent=1 // pred_region
      %27 = vsyncadd [#allocation3], 0
      %s28 = sshll.u32 %s0, 4
      %s29 = int_to_ptr.hbm [resolvable:$true] %s28
      %s30 = sshll.u32 [#allocation2], 4
      %s31 = int_to_ptr.vmem [resolvable:$true] %s30
      %36 = dma.hbm_to_vmem [thread:$0]  %s29, 256, %s31, [#allocation3], 32, 32, 2
    $region5: #{tpu_custom_call.1} parent=1 // pred_fallthru
      _
    // Predicated region
    $region6: #{tpu_custom_call.1} parent=1 // pred_check
      _
    $region7: #{tpu_custom_call.1} parent=1 // pred_check_branch
      %38 = sbr.rel (0) target = $region9
    $region8: #{tpu_custom_call.1} parent=1 // pred_region
      %40 = vsyncadd [#allocation7], 0
      %s41 = sshll.u32 %s1, 4
      %s42 = int_to_ptr.hbm [resolvable:$true] %s41
      %s43 = sshll.u32 [#allocation6], 4
      %s44 = int_to_ptr.vmem [resolvable:$true] %s43
      %49 = dma.hbm_to_vmem [thread:$0]  %s42, 256, %s44, [#allocation7], 32, 32, 2
    $region9: #{tpu_custom_call.1} parent=1 // pred_fallthru
      _
    // Predicated region
    $region10: #{tpu_custom_call.1} parent=1 // pred_check
      _
    $region11: #{tpu_custom_call.1} parent=1 // pred_check_branch
      %51 = sbr.rel (0) target = $region13
    $region12: #{tpu_custom_call.1} parent=1 // pred_region
      %53 = vsyncadd [#allocation7], 0
      %s54 = sshll.u32 %s2, 4
      %s55 = int_to_ptr.hbm [resolvable:$true] %s54
      %s56 = sshll.u32 [#allocation8], 4
      %s57 = int_to_ptr.vmem [resolvable:$true] %s56
      %62 = dma.hbm_to_vmem [thread:$0]  %s55, 256, %s57, [#allocation7], 32, 32, 2
    $region13: #{tpu_custom_call.1} parent=1 // pred_fallthru
      _
    // Predicated region
    $region14: #{tpu_custom_call.1} parent=1 // pred_check
      _
    $region15: #{tpu_custom_call.1} parent=1 // pred_check_branch
      %64 = sbr.rel (0) target = $region17
    $region16: #{tpu_custom_call.1} parent=1 // pred_region
      %66 = vsyncadd [#allocation5], 0
      %s68 = sshll.u32 %s3, 4
      %s69 = int_to_ptr.vmem [resolvable:$true] %s68
      %71 = dma.vmem_to_smem %s69, 64, [#allocation9], [#allocation5]
    $region17: #{tpu_custom_call.1} parent=1 // pred_fallthru
      _
    // Predicated region
    $region18: #{tpu_custom_call.1} parent=1 // pred_check
      _
    $region19: #{tpu_custom_call.1} parent=1 // pred_check_branch
      %73 = sbr.rel (0) target = $region21
    $region20: #{tpu_custom_call.1} parent=1 // pred_region
      %75 = vsyncadd [#allocation11], 0
      %s77 = sshll.u32 %s4, 4
      %s78 = int_to_ptr.vmem [resolvable:$true] %s77
      %80 = dma.vmem_to_smem %s78, 64, [#allocation10], [#allocation11]
    $region21: #{tpu_custom_call.1} parent=1 // pred_fallthru
      _
    // Predicated region
    $region22: #{tpu_custom_call.1} parent=1 // pred_check
      _
    $region23: #{tpu_custom_call.1} parent=1 // pred_check_branch
      %82 = sbr.rel (0) target = $region25
    $region24: #{tpu_custom_call.1} parent=1 // pred_region
      %84 = vsyncadd [#allocation11], 0
      %s86 = sshll.u32 %s5, 4
      %s87 = int_to_ptr.vmem [resolvable:$true] %s86
      %89 = dma.vmem_to_smem %s87, 16, [#allocation12], [#allocation11]
    $region25: #{tpu_custom_call.1} parent=1 // pred_fallthru
      _
    // Predicated region
    $region26: #{tpu_custom_call.1} parent=1 // pred_check
      _
    $region27: #{tpu_custom_call.1} parent=1 // pred_check_branch
      %91 = sbr.rel (0) target = $region29
    $region28: #{tpu_custom_call.1} parent=1 // pred_region
      %93 = vsyncadd [#allocation14], 0
      %s95 = sshll.u32 %s6, 4
      %s96 = int_to_ptr.vmem [resolvable:$true] %s95
      %98 = dma.vmem_to_smem %s96, 16, [#allocation13], [#allocation14]
    $region29: #{tpu_custom_call.1} parent=1 // pred_fallthru
      _
    // Predicated region
    $region30: #{tpu_custom_call.1} parent=1 // pred_check
      _
    $region31: #{tpu_custom_call.1} parent=1 // pred_check_branch
      %100 = sbr.rel (0) target = $region33
    $region32: #{tpu_custom_call.1} parent=1 // pred_region
      %102 = vsyncadd [#allocation14], 0
      %s104 = sshll.u32 %s7, 4
      %s105 = int_to_ptr.vmem [resolvable:$true] %s104
      %107 = dma.vmem_to_smem %s105, 16, [#allocation15], [#allocation14]
    $region33: #{tpu_custom_call.1} parent=1 // pred_fallthru
      _
    // Predicated region
    $region34: #{tpu_custom_call.1} parent=1 // pred_check
      _
    $region35: #{tpu_custom_call.1} parent=1 // pred_check_branch
      %109 = sbr.rel (0) target = $region37
    $region36: #{tpu_custom_call.1} parent=1 // pred_region
      %111 = vsyncadd [#allocation17], 0
      %s113 = sshll.u32 %s8, 4
      %s114 = int_to_ptr.vmem [resolvable:$true] %s113
      %116 = dma.vmem_to_smem %s114, 16, [#allocation16], [#allocation17]
    $region37: #{tpu_custom_call.1} parent=1 // pred_fallthru
      _
    // Predicated region
    $region38: #{tpu_custom_call.1} parent=1 // pred_check
      _
    $region39: #{tpu_custom_call.1} parent=1 // pred_check_branch
      %118 = sbr.rel (0) target = $region41
    $region40: #{tpu_custom_call.1} parent=1 // pred_region
      %120 = dma.done [#allocation3], 256
    $region41: #{tpu_custom_call.1} parent=1 // pred_fallthru
      _
    // Predicated region
    $region42: #{tpu_custom_call.1} parent=1 // pred_check
      _
    $region43: #{tpu_custom_call.1} parent=1 // pred_check_branch
      %122 = sbr.rel (0) target = $region45
    $region44: #{tpu_custom_call.1} parent=1 // pred_region
      %124 = dma.done [#allocation7], 256
    $region45: #{tpu_custom_call.1} parent=1 // pred_fallthru
      _
    // Predicated region
    $region46: #{tpu_custom_call.1} parent=1 // pred_check
      _
    $region47: #{tpu_custom_call.1} parent=1 // pred_check_branch
      %126 = sbr.rel (0) target = $region49
    $region48: #{tpu_custom_call.1} parent=1 // pred_region
      %128 = dma.done [#allocation7], 256
    $region49: #{tpu_custom_call.1} parent=1 // pred_fallthru
      _
    // Predicated region
    $region50: #{tpu_custom_call.1} parent=1 // pred_check
      _
    $region51: #{tpu_custom_call.1} parent=1 // pred_check_branch
      %130 = sbr.rel (0) target = $region53
    $region52: #{tpu_custom_call.1} parent=1 // pred_region
      %132 = dma.done [#allocation5], 64
    $region53: #{tpu_custom_call.1} parent=1 // pred_fallthru
      _
    // Predicated region
    $region54: #{tpu_custom_call.1} parent=1 // pred_check
      _
    $region55: #{tpu_custom_call.1} parent=1 // pred_check_branch
      %134 = sbr.rel (0) target = $region57
    $region56: #{tpu_custom_call.1} parent=1 // pred_region
      %136 = dma.done [#allocation11], 64
    $region57: #{tpu_custom_call.1} parent=1 // pred_fallthru
      _
    // Predicated region
    $region58: #{tpu_custom_call.1} parent=1 // pred_check
      _
    $region59: #{tpu_custom_call.1} parent=1 // pred_check_branch
      %138 = sbr.rel (0) target = $region61
    $region60: #{tpu_custom_call.1} parent=1 // pred_region
      %140 = dma.done [#allocation11], 16
    $region61: #{tpu_custom_call.1} parent=1 // pred_fallthru
      _
    // Predicated region
    $region62: #{tpu_custom_call.1} parent=1 // pred_check
      _
    $region63: #{tpu_custom_call.1} parent=1 // pred_check_branch
      %142 = sbr.rel (0) target = $region65
    $region64: #{tpu_custom_call.1} parent=1 // pred_region
      %144 = dma.done [#allocation14], 16
    $region65: #{tpu_custom_call.1} parent=1 // pred_fallthru
      _
    // Predicated region
    $region66: #{tpu_custom_call.1} parent=1 // pred_check
      _
    $region67: #{tpu_custom_call.1} parent=1 // pred_check_branch
      %146 = sbr.rel (0) target = $region69
    $region68: #{tpu_custom_call.1} parent=1 // pred_region
      %148 = dma.done [#allocation14], 16
    $region69: #{tpu_custom_call.1} parent=1 // pred_fallthru
      _
    // Predicated region
    $region70: #{tpu_custom_call.1} parent=1 // pred_check
      _
    $region71: #{tpu_custom_call.1} parent=1 // pred_check_branch
      %150 = sbr.rel (0) target = $region73
    $region72: #{tpu_custom_call.1} parent=1 // pred_region
      %152 = dma.done [#allocation17], 16
    $region73: #{tpu_custom_call.1} parent=1 // pred_fallthru
      _
    %153 = sfence
    %s154 = sld [smem:[#allocation12]]
    %s155 = sld [smem:[#allocation13]]
    %s156 = sld [smem:[#allocation15]]
    %s157 = sld [smem:[#allocation16]]
    %v158 = vld [vmem:[#allocation6] sm:$0x3]
    %s159 = scalar_lea.vmem [#allocation6], 2
    %v160 = vld [vmem:[%s159] sm:$0x3]
    %s161 = scalar_lea.vmem [#allocation6], 4
    %v162 = vld [vmem:[%s161] sm:$0x3]
    %s163 = scalar_lea.vmem [#allocation6], 6
    %v164 = vld [vmem:[%s163] sm:$0x3]
    %v165 = vld [vmem:[#allocation2] sm:$0x3]
    %v166 = vstv %s154
    %v167 = vmul.f32 %v166, %v165
    %v168 = vld [vmem:[#allocation8] sm:$0x3]
    %v169 = vstv %s155
    %v170 = vmul.f32 %v169, %v168
    %v171 = vadd.f32 %v167, %v170
    %s172 = scalar_lea.vmem [#allocation2], 2
    %v173 = vld [vmem:[%s172] sm:$0x3]
    %v174 = vmul.f32 %v166, %v173
    %s175 = scalar_lea.vmem [#allocation8], 2
    %v176 = vld [vmem:[%s175] sm:$0x3]
    %v177 = vmul.f32 %v169, %v176
    %v178 = vadd.f32 %v174, %v177
    %s179 = scalar_lea.vmem [#allocation2], 4
    %v180 = vld [vmem:[%s179] sm:$0x3]
    %v181 = vmul.f32 %v166, %v180
    %s182 = scalar_lea.vmem [#allocation8], 4
    %v183 = vld [vmem:[%s182] sm:$0x3]
    %v184 = vmul.f32 %v169, %v183
    %v185 = vadd.f32 %v181, %v184
    %s186 = scalar_lea.vmem [#allocation2], 6
    %v187 = vld [vmem:[%s186] sm:$0x3]
    %v188 = vmul.f32 %v166, %v187
    %s189 = scalar_lea.vmem [#allocation8], 6
    %v190 = vld [vmem:[%s189] sm:$0x3]
    %v191 = vmul.f32 %v169, %v190
    %v192 = vadd.f32 %v188, %v191
    %s193 = sld [smem:[#allocation10]]
    %s194 = sld [smem:[#allocation9]]
    %v195 = vstv %s194
    %v196 = vmul.f32 %v195, %v158
    %v197 = vstv %s193
    %v198 = vadd.f32 %v197, %v196
    %s199 = sld [smem:[#allocation9 + $0x4]]
    %v200 = vstv %s199
    %v201 = vmul.f32 %v200, %v171
    %v202 = vadd.f32 %v198, %v201
    %s203 = sld [smem:[#allocation9 + $0x1]]
    %v204 = vstv %s203
    %v205 = vmul.f32 %v204, %v160
    %v206 = vadd.f32 %v202, %v205
    %s207 = sld [smem:[#allocation9 + $0x5]]
    %v208 = vstv %s207
    %v209 = vmul.f32 %v208, %v178
    %v210 = vadd.f32 %v206, %v209
    %s211 = sld [smem:[#allocation9 + $0x2]]
    %v212 = vstv %s211
    %v213 = vmul.f32 %v212, %v162
    %v214 = vadd.f32 %v210, %v213
    %s215 = sld [smem:[#allocation9 + $0x6]]
    %v216 = vstv %s215
    %v217 = vmul.f32 %v216, %v185
    %v218 = vadd.f32 %v214, %v217
    %s219 = sld [smem:[#allocation9 + $0x3]]
    %v220 = vstv %s219
    %v221 = vmul.f32 %v220, %v164
    %v222 = vadd.f32 %v218, %v221
    %s223 = sld [smem:[#allocation9 + $0x7]]
    %v224 = vstv %s223
    %v225 = vmul.f32 %v224, %v192
    %v226 = vadd.f32 %v222, %v225
    %v227 = vstv %s156
    %v228 = vmul.f32 %v227, %v171
    %v229 = vstv %s157
    %v230 = vmul.f32 %v229, %v226
    %v231 = vsub.f32 %v228, %v230
    %v232 = vmax.f32 %v231, -1.0
    %v233 = vmin.f32 %v232, 1.0
    %v234 = vadd.f32 %v233, 1.0
    %v235 = vmul.f32 %v234, 0.5
    %236 = vst [vmem:[#allocation18] sm:$0x3] %v235
    %v237 = vld [vmem:[#allocation8] sm:$0x3]
    %v238 = vsub.f32 %v237, %v226
    %v239 = vand.u32 2147483647, %v238
    %v240 = vadd.f32 %v239, 0.0
    %s241 = sld [smem:[#allocation10 + $0x80]]
    %s242 = sld [smem:[#allocation9 + $0x80]]
    %v243 = vstv %s242
    %v244 = vmul.f32 %v243, %v158
    %v245 = vstv %s241
    %v246 = vadd.f32 %v245, %v244
    %s247 = sld [smem:[#allocation9 + $0x84]]
    %v248 = vstv %s247
    %v249 = vmul.f32 %v248, %v171
    %v250 = vadd.f32 %v246, %v249
    %s251 = sld [smem:[#allocation9 + $0x81]]
    %v252 = vstv %s251
    %v253 = vmul.f32 %v252, %v160
    %v254 = vadd.f32 %v250, %v253
    %s255 = sld [smem:[#allocation9 + $0x85]]
    %v256 = vstv %s255
    %v257 = vmul.f32 %v256, %v178
    %v258 = vadd.f32 %v254, %v257
    %s259 = sld [smem:[#allocation9 + $0x82]]
    %v260 = vstv %s259
    %v261 = vmul.f32 %v260, %v162
    %v262 = vadd.f32 %v258, %v261
    %s263 = sld [smem:[#allocation9 + $0x86]]
    %v264 = vstv %s263
    %v265 = vmul.f32 %v264, %v185
    %v266 = vadd.f32 %v262, %v265
    %s267 = sld [smem:[#allocation9 + $0x83]]
    %v268 = vstv %s267
    %v269 = vmul.f32 %v268, %v164
    %v270 = vadd.f32 %v266, %v269
    %s271 = sld [smem:[#allocation9 + $0x87]]
    %v272 = vstv %s271
    %v273 = vmul.f32 %v272, %v192
    %v274 = vadd.f32 %v270, %v273
    %v275 = vmul.f32 %v227, %v178
    %v276 = vmul.f32 %v229, %v274
    %v277 = vsub.f32 %v275, %v276
    %v278 = vmax.f32 %v277, -1.0
    %v279 = vmin.f32 %v278, 1.0
    %v280 = vadd.f32 %v279, 1.0
    %v281 = vmul.f32 %v280, 0.5
    %s282 = scalar_lea.vmem [#allocation18], 2
    %283 = vst [vmem:[%s282] sm:$0x3] %v281
    %v284 = vld [vmem:[%s175] sm:$0x3]
    %v285 = vsub.f32 %v284, %v274
    %v286 = vand.u32 2147483647, %v285
    %v287 = vadd.f32 %v240, %v286
    %s288 = sld [smem:[#allocation10 + $0x100]]
    %s289 = sld [smem:[#allocation9 + $0x100]]
    %v290 = vstv %s289
    %v291 = vmul.f32 %v290, %v158
    %v292 = vstv %s288
    %v293 = vadd.f32 %v292, %v291
    %s294 = sld [smem:[#allocation9 + $0x104]]
    %v295 = vstv %s294
    %v296 = vmul.f32 %v295, %v171
    %v297 = vadd.f32 %v293, %v296
    %s298 = sld [smem:[#allocation9 + $0x101]]
    %v299 = vstv %s298
    %v300 = vmul.f32 %v299, %v160
    %v301 = vadd.f32 %v297, %v300
    %s302 = sld [smem:[#allocation9 + $0x105]]
    %v303 = vstv %s302
    %v304 = vmul.f32 %v303, %v178
    %v305 = vadd.f32 %v301, %v304
    %s306 = sld [smem:[#allocation9 + $0x102]]
    %v307 = vstv %s306
    %v308 = vmul.f32 %v307, %v162
    %v309 = vadd.f32 %v305, %v308
    %s310 = sld [smem:[#allocation9 + $0x106]]
    %v311 = vstv %s310
    %v312 = vmul.f32 %v311, %v185
    %v313 = vadd.f32 %v309, %v312
    %s314 = sld [smem:[#allocation9 + $0x103]]
    %v315 = vstv %s314
    %v316 = vmul.f32 %v315, %v164
    %v317 = vadd.f32 %v313, %v316
    %s318 = sld [smem:[#allocation9 + $0x107]]
    %v319 = vstv %s318
    %v320 = vmul.f32 %v319, %v192
    %v321 = vadd.f32 %v317, %v320
    %v322 = vmul.f32 %v227, %v185
    %v323 = vmul.f32 %v229, %v321
    %v324 = vsub.f32 %v322, %v323
    %v325 = vmax.f32 %v324, -1.0
    %v326 = vmin.f32 %v325, 1.0
    %v327 = vadd.f32 %v326, 1.0
    %v328 = vmul.f32 %v327, 0.5
    %s329 = scalar_lea.vmem [#allocation18], 4
    %330 = vst [vmem:[%s329] sm:$0x3] %v328
    %v331 = vld [vmem:[%s182] sm:$0x3]
    %v332 = vsub.f32 %v331, %v321
    %v333 = vand.u32 2147483647, %v332
    %v334 = vadd.f32 %v287, %v333
    %s335 = sld [smem:[#allocation10 + $0x180]]
    %s336 = sld [smem:[#allocation9 + $0x180]]
    %v337 = vstv %s336
    %v338 = vmul.f32 %v337, %v158
    %v339 = vstv %s335
    %v340 = vadd.f32 %v339, %v338
    %s341 = sld [smem:[#allocation9 + $0x184]]
    %v342 = vstv %s341
    %v343 = vmul.f32 %v342, %v171
    %v344 = vadd.f32 %v340, %v343
    %s345 = sld [smem:[#allocation9 + $0x181]]
    %v346 = vstv %s345
    %v347 = vmul.f32 %v346, %v160
    %v348 = vadd.f32 %v344, %v347
    %s349 = sld [smem:[#allocation9 + $0x185]]
    %v350 = vstv %s349
    %v351 = vmul.f32 %v350, %v178
    %v352 = vadd.f32 %v348, %v351
    %s353 = sld [smem:[#allocation9 + $0x182]]
    %v354 = vstv %s353
    %v355 = vmul.f32 %v354, %v162
    %v356 = vadd.f32 %v352, %v355
    %s357 = sld [smem:[#allocation9 + $0x186]]
    %v358 = vstv %s357
    %v359 = vmul.f32 %v358, %v185
    %v360 = vadd.f32 %v356, %v359
    %s361 = sld [smem:[#allocation9 + $0x183]]
    %v362 = vstv %s361
    %v363 = vmul.f32 %v362, %v164
    %v364 = vadd.f32 %v360, %v363
    %s365 = sld [smem:[#allocation9 + $0x187]]
    %v366 = vstv %s365
    %v367 = vmul.f32 %v366, %v192
    %v368 = vadd.f32 %v364, %v367
    %v369 = vmul.f32 %v227, %v192
    %v370 = vmul.f32 %v229, %v368
    %v371 = vsub.f32 %v369, %v370
    %v372 = vmax.f32 %v371, -1.0
    %v373 = vmin.f32 %v372, 1.0
    %v374 = vadd.f32 %v373, 1.0
    %v375 = vmul.f32 %v374, 0.5
    %s376 = scalar_lea.vmem [#allocation18], 6
    %377 = vst [vmem:[%s376] sm:$0x3] %v375
    %v378 = vld [vmem:[%s189] sm:$0x3]
    %v379 = vsub.f32 %v378, %v368
    %v380 = vand.u32 2147483647, %v379
    %v381 = vadd.f32 %v334, %v380
    %s382 = sld [smem:[#allocation12 + $0x1]]
    %s383 = sld [smem:[#allocation13 + $0x1]]
    %s384 = sld [smem:[#allocation15 + $0x1]]
    %s385 = sld [smem:[#allocation16 + $0x1]]
    %s386 = scalar_lea.vmem [#allocation6], 8
    %v387 = vld [vmem:[%s386] sm:$0x3]
    %s388 = scalar_lea.vmem [#allocation6], 10
    %v389 = vld [vmem:[%s388] sm:$0x3]
    %s390 = scalar_lea.vmem [#allocation6], 12
    %v391 = vld [vmem:[%s390] sm:$0x3]
    %s392 = scalar_lea.vmem [#allocation6], 14
    %v393 = vld [vmem:[%s392] sm:$0x3]
    %s394 = scalar_lea.vmem [#allocation2], 8
    %v395 = vld [vmem:[%s394] sm:$0x3]
    %v396 = vstv %s382
    %v397 = vmul.f32 %v396, %v395
    %s398 = scalar_lea.vmem [#allocation8], 8
    %v399 = vld [vmem:[%s398] sm:$0x3]
    %v400 = vstv %s383
    %v401 = vmul.f32 %v400, %v399
    %v402 = vadd.f32 %v397, %v401
    %s403 = scalar_lea.vmem [#allocation2], 10
    %v404 = vld [vmem:[%s403] sm:$0x3]
    %v405 = vmul.f32 %v396, %v404
    %s406 = scalar_lea.vmem [#allocation8], 10
    %v407 = vld [vmem:[%s406] sm:$0x3]
    %v408 = vmul.f32 %v400, %v407
    %v409 = vadd.f32 %v405, %v408
    %s410 = scalar_lea.vmem [#allocation2], 12
    %v411 = vld [vmem:[%s410] sm:$0x3]
    %v412 = vmul.f32 %v396, %v411
    %s413 = scalar_lea.vmem [#allocation8], 12
    %v414 = vld [vmem:[%s413] sm:$0x3]
    %v415 = vmul.f32 %v400, %v414
    %v416 = vadd.f32 %v412, %v415
    %s417 = scalar_lea.vmem [#allocation2], 14
    %v418 = vld [vmem:[%s417] sm:$0x3]
    %v419 = vmul.f32 %v396, %v418
    %s420 = scalar_lea.vmem [#allocation8], 14
    %v421 = vld [vmem:[%s420] sm:$0x3]
    %v422 = vmul.f32 %v400, %v421
    %v423 = vadd.f32 %v419, %v422
    %s424 = sld [smem:[#allocation10 + $0x1]]
    %s425 = sld [smem:[#allocation9]]
    %v426 = vstv %s425
    %v427 = vmul.f32 %v426, %v387
    %v428 = vstv %s424
    %v429 = vadd.f32 %v428, %v427
    %s430 = sld [smem:[#allocation9 + $0x4]]
    %v431 = vstv %s430
    %v432 = vmul.f32 %v431, %v402
    %v433 = vadd.f32 %v429, %v432
    %s434 = sld [smem:[#allocation9 + $0x1]]
    %v435 = vstv %s434
    %v436 = vmul.f32 %v435, %v389
    %v437 = vadd.f32 %v433, %v436
    %s438 = sld [smem:[#allocation9 + $0x5]]
    %v439 = vstv %s438
    %v440 = vmul.f32 %v439, %v409
    %v441 = vadd.f32 %v437, %v440
    %s442 = sld [smem:[#allocation9 + $0x2]]
    %v443 = vstv %s442
    %v444 = vmul.f32 %v443, %v391
    %v445 = vadd.f32 %v441, %v444
    %s446 = sld [smem:[#allocation9 + $0x6]]
    %v447 = vstv %s446
    %v448 = vmul.f32 %v447, %v416
    %v449 = vadd.f32 %v445, %v448
    %s450 = sld [smem:[#allocation9 + $0x3]]
    %v451 = vstv %s450
    %v452 = vmul.f32 %v451, %v393
    %v453 = vadd.f32 %v449, %v452
    %s454 = sld [smem:[#allocation9 + $0x7]]
    %v455 = vstv %s454
    %v456 = vmul.f32 %v455, %v423
    %v457 = vadd.f32 %v453, %v456
    %v458 = vstv %s384
    %v459 = vmul.f32 %v458, %v402
    %v460 = vstv %s385
    %v461 = vmul.f32 %v460, %v457
    %v462 = vsub.f32 %v459, %v461
    %v463 = vmax.f32 %v462, -1.0
    %v464 = vmin.f32 %v463, 1.0
    %v465 = vadd.f32 %v464, 1.0
    %v466 = vmul.f32 %v465, 0.5
    %s467 = scalar_lea.vmem [#allocation18], 8
    %468 = vst [vmem:[%s467] sm:$0x3] %v466
    %v469 = vld [vmem:[%s398] sm:$0x3]
    %v470 = vsub.f32 %v469, %v457
    %v471 = vand.u32 2147483647, %v470
    %v472 = vadd.f32 %v381, %v471
    %s473 = sld [smem:[#allocation10 + $0x81]]
    %s474 = sld [smem:[#allocation9 + $0x80]]
    %v475 = vstv %s474
    %v476 = vmul.f32 %v475, %v387
    %v477 = vstv %s473
    %v478 = vadd.f32 %v477, %v476
    %s479 = sld [smem:[#allocation9 + $0x84]]
    %v480 = vstv %s479
    %v481 = vmul.f32 %v480, %v402
    %v482 = vadd.f32 %v478, %v481
    %s483 = sld [smem:[#allocation9 + $0x81]]
    %v484 = vstv %s483
    %v485 = vmul.f32 %v484, %v389
    %v486 = vadd.f32 %v482, %v485
    %s487 = sld [smem:[#allocation9 + $0x85]]
    %v488 = vstv %s487
    %v489 = vmul.f32 %v488, %v409
    %v490 = vadd.f32 %v486, %v489
    %s491 = sld [smem:[#allocation9 + $0x82]]
    %v492 = vstv %s491
    %v493 = vmul.f32 %v492, %v391
    %v494 = vadd.f32 %v490, %v493
    %s495 = sld [smem:[#allocation9 + $0x86]]
    %v496 = vstv %s495
    %v497 = vmul.f32 %v496, %v416
    %v498 = vadd.f32 %v494, %v497
    %s499 = sld [smem:[#allocation9 + $0x83]]
    %v500 = vstv %s499
    %v501 = vmul.f32 %v500, %v393
    %v502 = vadd.f32 %v498, %v501
    %s503 = sld [smem:[#allocation9 + $0x87]]
    %v504 = vstv %s503
    %v505 = vmul.f32 %v504, %v423
    %v506 = vadd.f32 %v502, %v505
    %v507 = vmul.f32 %v458, %v409
    %v508 = vmul.f32 %v460, %v506
    %v509 = vsub.f32 %v507, %v508
    %v510 = vmax.f32 %v509, -1.0
    %v511 = vmin.f32 %v510, 1.0
    %v512 = vadd.f32 %v511, 1.0
    %v513 = vmul.f32 %v512, 0.5
    %s514 = scalar_lea.vmem [#allocation18], 10
    %515 = vst [vmem:[%s514] sm:$0x3] %v513
    %v516 = vld [vmem:[%s406] sm:$0x3]
    %v517 = vsub.f32 %v516, %v506
    %v518 = vand.u32 2147483647, %v517
    %v519 = vadd.f32 %v472, %v518
    %s520 = sld [smem:[#allocation10 + $0x101]]
    %s521 = sld [smem:[#allocation9 + $0x100]]
    %v522 = vstv %s521
    %v523 = vmul.f32 %v522, %v387
    %v524 = vstv %s520
    %v525 = vadd.f32 %v524, %v523
    %s526 = sld [smem:[#allocation9 + $0x104]]
    %v527 = vstv %s526
    %v528 = vmul.f32 %v527, %v402
    %v529 = vadd.f32 %v525, %v528
    %s530 = sld [smem:[#allocation9 + $0x101]]
    %v531 = vstv %s530
    %v532 = vmul.f32 %v531, %v389
    %v533 = vadd.f32 %v529, %v532
    %s534 = sld [smem:[#allocation9 + $0x105]]
    %v535 = vstv %s534
    %v536 = vmul.f32 %v535, %v409
    %v537 = vadd.f32 %v533, %v536
    %s538 = sld [smem:[#allocation9 + $0x102]]
    %v539 = vstv %s538
    %v540 = vmul.f32 %v539, %v391
    %v541 = vadd.f32 %v537, %v540
    %s542 = sld [smem:[#allocation9 + $0x106]]
    %v543 = vstv %s542
    %v544 = vmul.f32 %v543, %v416
    %v545 = vadd.f32 %v541, %v544
    %s546 = sld [smem:[#allocation9 + $0x103]]
    %v547 = vstv %s546
    %v548 = vmul.f32 %v547, %v393
    %v549 = vadd.f32 %v545, %v548
    %s550 = sld [smem:[#allocation9 + $0x107]]
    %v551 = vstv %s550
    %v552 = vmul.f32 %v551, %v423
    %v553 = vadd.f32 %v549, %v552
    %v554 = vmul.f32 %v458, %v416
    %v555 = vmul.f32 %v460, %v553
    %v556 = vsub.f32 %v554, %v555
    %v557 = vmax.f32 %v556, -1.0
    %v558 = vmin.f32 %v557, 1.0
    %v559 = vadd.f32 %v558, 1.0
    %v560 = vmul.f32 %v559, 0.5
    %s561 = scalar_lea.vmem [#allocation18], 12
    %562 = vst [vmem:[%s561] sm:$0x3] %v560
    %v563 = vld [vmem:[%s413] sm:$0x3]
    %v564 = vsub.f32 %v563, %v553
    %v565 = vand.u32 2147483647, %v564
    %v566 = vadd.f32 %v519, %v565
    %s567 = sld [smem:[#allocation10 + $0x181]]
    %s568 = sld [smem:[#allocation9 + $0x180]]
    %v569 = vstv %s568
    %v570 = vmul.f32 %v569, %v387
    %v571 = vstv %s567
    %v572 = vadd.f32 %v571, %v570
    %s573 = sld [smem:[#allocation9 + $0x184]]
    %v574 = vstv %s573
    %v575 = vmul.f32 %v574, %v402
    %v576 = vadd.f32 %v572, %v575
    %s577 = sld [smem:[#allocation9 + $0x181]]
    %v578 = vstv %s577
    %v579 = vmul.f32 %v578, %v389
    %v580 = vadd.f32 %v576, %v579
    %s581 = sld [smem:[#allocation9 + $0x185]]
    %v582 = vstv %s581
    %v583 = vmul.f32 %v582, %v409
    %v584 = vadd.f32 %v580, %v583
    %s585 = sld [smem:[#allocation9 + $0x182]]
    %v586 = vstv %s585
    %v587 = vmul.f32 %v586, %v391
    %v588 = vadd.f32 %v584, %v587
    %s589 = sld [smem:[#allocation9 + $0x186]]
    %v590 = vstv %s589
    %v591 = vmul.f32 %v590, %v416
    %v592 = vadd.f32 %v588, %v591
    %s593 = sld [smem:[#allocation9 + $0x183]]
    %v594 = vstv %s593
    %v595 = vmul.f32 %v594, %v393
    %v596 = vadd.f32 %v592, %v595
    %s597 = sld [smem:[#allocation9 + $0x187]]
    %v598 = vstv %s597
    %v599 = vmul.f32 %v598, %v423
    %v600 = vadd.f32 %v596, %v599
    %v601 = vmul.f32 %v458, %v423
    %v602 = vmul.f32 %v460, %v600
    %v603 = vsub.f32 %v601, %v602
    %v604 = vmax.f32 %v603, -1.0
    %v605 = vmin.f32 %v604, 1.0
    %v606 = vadd.f32 %v605, 1.0
    %v607 = vmul.f32 %v606, 0.5
    %s608 = scalar_lea.vmem [#allocation18], 14
    %609 = vst [vmem:[%s608] sm:$0x3] %v607
    %v610 = vld [vmem:[%s420] sm:$0x3]
    %v611 = vsub.f32 %v610, %v600
    %v612 = vand.u32 2147483647, %v611
    %v613 = vadd.f32 %v566, %v612
    %614 = vst [vmem:[#allocation19] sm:$0x3] %v613
    // Predicated region
    $region74: #{tpu_custom_call.1} parent=1 // pred_check
      _
    $region75: #{tpu_custom_call.1} parent=1 // pred_check_branch
      %616 = sbr.rel (0) target = $region77
    $region76: #{tpu_custom_call.1} parent=1 // pred_region
      %618 = vsyncadd [#allocation4], 0
      %s619 = sshll.u32 [#allocation18], 4
      %s620 = int_to_ptr.vmem [resolvable:$true] %s619
      %s621 = sshll.u32 %s9, 4
      %s622 = int_to_ptr.hbm [resolvable:$true] %s621
      %627 = dma.vmem_to_hbm [thread:$0]  %s620, 256, %s622, [#allocation4], 32, 32, 2
    $region77: #{tpu_custom_call.1} parent=1 // pred_fallthru
      _
    // Predicated region
    $region78: #{tpu_custom_call.1} parent=1 // pred_check
      _
    $region79: #{tpu_custom_call.1} parent=1 // pred_check_branch
      %629 = sbr.rel (0) target = $region81
    $region80: #{tpu_custom_call.1} parent=1 // pred_region
      %631 = vsyncadd [#allocation20], 0
      %s633 = sshll.u32 [#allocation19], 4
      %s634 = int_to_ptr.vmem [resolvable:$true] %s633
      %s635 = sshll.u32 %s10, 4
      %s636 = int_to_ptr.hbm [resolvable:$true] %s635
      %638 = dma.vmem_to_hbm [thread:$0]  %s634, 32, %s636, [#allocation20]
    $region81: #{tpu_custom_call.1} parent=1 // pred_fallthru
      _
    // Predicated region
    $region82: #{tpu_custom_call.1} parent=1 // pred_check
      _
    $region83: #{tpu_custom_call.1} parent=1 // pred_check_branch
      %640 = sbr.rel (0) target = $region85
    $region84: #{tpu_custom_call.1} parent=1 // pred_region
      %642 = dma.done [#allocation4], 256
    $region85: #{tpu_custom_call.1} parent=1 // pred_fallthru
      _
    // Predicated region
    $region86: #{tpu_custom_call.1} parent=1 // pred_check
      _
    $region87: #{tpu_custom_call.1} parent=1 // pred_check_branch
      %644 = sbr.rel (0) target = $region89
    $region88: #{tpu_custom_call.1} parent=1 // pred_region
      %646 = dma.done [#allocation20], 32
    $region89: #{tpu_custom_call.1} parent=1 // pred_fallthru
      _
    %647 = vsyncpa [#allocation3], 1
    %648 = vsyncpa [#allocation7], 1
    %649 = vsyncpa [#allocation4], 1
    %650 = vsyncpa [#allocation20], 1
    %651 = vsyncpa [#allocation5], 1
    %652 = vsyncpa [#allocation11], 1
    %653 = vsyncpa [#allocation14], 1
    %654 = vsyncpa [#allocation17], 1

</llo_original>
